<compile_context>
chip_gen: v7x
topology: tpu7x:2x2x1
jax: 0.10.0
libtpu: 0.0.40
codegen_flags: <defaults>
</compile_context>

<pallas_src>
import functools
import math

import jax
import jax.numpy as jnp
from jax.experimental import pallas as pl
from jax.experimental.pallas import tpu as pltpu

LANE = 128


def _round_up(x, m):
    return ((x + m - 1) // m) * m


def _cdiv(a, b):
    return -(-a // b)


# -----------------------------------------------------------------------------
# Fused kernel: embedder stack -> zero time-prefix -> contexter stack.
# One grid step handles `bt` batch elements; all intermediates stay in VMEM/vregs.
# -----------------------------------------------------------------------------
def _convcpc_fused_kernel(x_ref, we_ref, be_ref, wc_ref, bc_ref,
                          emb_ref, ctx_ref, *, k_emb, k_ctx, crop_pre,
                          c_emb, c_ctx):
    """
    x_ref  : (bt, T_in, C_in)             f32  un-padded input (time, real channels)
    we_ref : (n_emb, k_emb*C_pad, C_pad)  bf16 im2col-packed embedder weights
    be_ref : (n_emb, 1, C_pad)            f32  embedder biases
    wc_ref : (n_ctx, k_ctx*C_pad, C_pad)  bf16 im2col-packed contexter weights
    bc_ref : (n_ctx, 1, C_pad)            f32  contexter biases
    emb_ref: (bt, c_emb, T_emb)           f32  embedder output, NCW, real channels
    ctx_ref: (bt, c_ctx, T_ctx)           f32  contexter output, NCW, real channels
    """
    bt, t_in, c_in = x_ref.shape
    c_pad = we_ref.shape[2]

    # Lane-pad the real channels to the internal 128-lane width *inside* VMEM
    # (HBM never carries padded lanes) and cast to bf16 once, up front.
    lane_pad = jnp.zeros((t_in, c_pad - c_in), jnp.bfloat16)
    x = x_ref[...]
    hs = [jnp.concatenate([x[b].astype(jnp.bfloat16), lane_pad], axis=1)
          for b in range(bt)]                                 # bt x (T_in, C_pad) bf16

    def conv_stack(hs, w_ref, b_ref, ksize):
        """Static-unrolled 'valid' conv stack; ReLU between layers, none after last.

        Each layer is ONE matmul with M = bt * T_out: per-batch im2col blocks
        (built from bf16 activations) are stacked along rows so the MXU row tile
        (128 on v5e / 256 on v6e,v7x) is filled far better than a single batch
        element's ~T_out rows.
        """
        n_layers = w_ref.shape[0]
        for layer in range(n_layers):
            t_out = hs[0].shape[0] - ksize + 1
            if ksize > 1:
                # im2col per batch element: (T_out, ksize*C_pad), tap-major columns.
                blocks = [
                    jnp.concatenate([h[k:k + t_out, :] for k in range(ksize)], axis=1)
                    for h in hs
                ]
            else:
                blocks = hs
            h_col = blocks[0] if bt == 1 else jnp.concatenate(blocks, axis=0)
            # bf16 MXU inputs, f32 accumulation; f32 bias/ReLU epilogue (v5e-safe).
            acc = jnp.dot(h_col, w_ref[layer], preferred_element_type=jnp.float32)
            acc = acc + b_ref[layer]                          # (1, C_pad) broadcast
            if layer < n_layers - 1:
                acc = jnp.maximum(acc, 0.0)
            outs_f32 = [acc[b * t_out:(b + 1) * t_out, :] for b in range(bt)]
            hs = [o.astype(jnp.bfloat16) for o in outs_f32]   # bf16 before next im2col
        return outs_f32, hs

    # ---- embedder ----
    emb_f32, emb_bf16 = conv_stack(hs, we_ref, be_ref, k_emb)
    for b in range(bt):
        # Channel-slice + NCW transpose folded into the kernel: only real channels
        # reach HBM, with time minor (lane-dense at realistic sequence lengths).
        emb_ref[b] = jnp.transpose(emb_f32[b])[:c_emb, :]

    # ---- torch.cat((zeros(crop_pre), X_emb), dim=time), fused in-kernel (bf16) ----
    if crop_pre > 0:
        zeros = jnp.zeros((crop_pre, c_pad), jnp.bfloat16)
        hs = [jnp.concatenate([zeros, h], axis=0) for h in emb_bf16]
    else:
        hs = emb_bf16

    # ---- contexter ----
    ctx_f32, _ = conv_stack(hs, wc_ref, bc_ref, k_ctx)
    for b in range(bt):
        ctx_ref[b] = jnp.transpose(ctx_f32[b])[:c_ctx, :]


# -----------------------------------------------------------------------------
# Parameter construction (kaiming_normal_ mode='fan_out' like the PyTorch module)
# -----------------------------------------------------------------------------
def _kaiming_conv1d(key, c_in, c_out, ksize):
    # torch Conv1d weight is (C_out, C_in, K); fan_out = C_out * K; gain = sqrt(2).
    std = math.sqrt(2.0 / (c_out * ksize))
    w = std * jax.random.normal(key, (c_out, c_in, ksize), dtype=jnp.float32)
    return w, jnp.zeros((c_out,), jnp.float32)


def _make_conv_stack(key, channels, ksize):
    return [
        _kaiming_conv1d(jax.random.fold_in(key, i), ci, co, ksize)
        for i, (ci, co) in enumerate(zip(channels[:-1], channels[1:]))
    ]


def _pack_stack(layers, c_pad):
    """Pack a conv stack into im2col matmul form, zero-padded to c_pad channels.

    Returns (W, B): W (n_layers, K*c_pad, c_pad) bf16, B (n_layers, 1, c_pad) f32.
    W row k*c_pad + i  <->  tap k, input channel i (matches the in-kernel im2col).
    """
    ws, bs = [], []
    for w_oik, b in layers:
        c_out, c_in, k = w_oik.shape
        w_kio = jnp.transpose(w_oik, (2, 1, 0))                    # (K, C_in, C_out)
        w_kio = jnp.pad(w_kio, ((0, 0), (0, c_pad - c_in), (0, c_pad - c_out)))
        ws.append(w_kio.reshape(k * c_pad, c_pad))
        bs.append(jnp.pad(b, (0, c_pad - c_out)).reshape(1, c_pad))
    return jnp.stack(ws).astype(jnp.bfloat16), jnp.stack(bs).astype(jnp.float32)


# -----------------------------------------------------------------------------
# Pure-JAX references
# -----------------------------------------------------------------------------
def _conv1d_ref(x_ncw, w_oik, b):
    c_out, c_in, k = w_oik.shape
    t_out = x_ncw.shape[-1] - k + 1
    y = jnp.zeros((x_ncw.shape[0], c_out, t_out), jnp.float32)
    for kk in range(k):
        y = y + jnp.einsum('bct,oc->bot', x_ncw[:, :, kk:kk + t_out], w_oik[:, :, kk])
    return y + b[None, :, None]


def _stack_ref(layers, x):
    n = len(layers)
    for i, (w, b) in enumerate(layers):
        x = _conv1d_ref(x, w, b)
        if i < n - 1:
            x = jnp.maximum(x, 0.0)
    return x


def forward_ref_f32(model, X_ncw):
    """Full-precision reference (loose tolerance vs. the bf16-MXU kernel)."""
    emb = _stack_ref(model.embedder_raw, X_ncw)
    pad = jnp.zeros((X_ncw.shape[0], model.num_embeddings, model.crop_pre), emb.dtype)
    ctx = _stack_ref(model.contexter_raw, jnp.concatenate((pad, emb), axis=-1))
    return emb, ctx


def forward_ref_bf16(model, X_ncw):
    """Reference that mirrors the kernel numerics exactly (bf16 packed weights,
    bf16-rounded activations into every contraction, f32 accumulation, f32
    bias/ReLU epilogue) so the kernel can be checked to a tight tolerance."""
    B, c_in, _ = X_ncw.shape
    c_pad = model.c_pad
    x = jnp.transpose(X_ncw, (0, 2, 1))
    x = jnp.pad(x, ((0, 0), (0, 0), (0, c_pad - c_in)))
    h = x.astype(jnp.bfloat16)

    def stack(h, W, Bvec, ksize):
        n = W.shape[0]
        acc = None
        for layer in range(n):
            t_out = h.shape[1] - ksize + 1
            h_col = jnp.concatenate([h[:, k:k + t_out, :] for k in range(ksize)],
                                    axis=2)
            acc = jnp.einsum('btk,kc->btc', h_col, W[layer],
                             preferred_element_type=jnp.float32)
            acc = acc + Bvec[layer][None, :, :]
            if layer < n - 1:
                acc = jnp.maximum(acc, 0.0)
            h = acc.astype(jnp.bfloat16)
        return acc, h

    emb_f32, emb_bf16 = stack(h, model.we, model.be, model.k_emb)
    if model.crop_pre > 0:
        zeros = jnp.zeros((B, model.crop_pre, c_pad), jnp.bfloat16)
        ctx_in = jnp.concatenate([zeros, emb_bf16], axis=1)
    else:
        ctx_in = emb_bf16
    ctx_f32, _ = stack(ctx_in, model.wc, model.bc, model.k_ctx)
    emb = jnp.transpose(emb_f32[:, :, :model.num_embeddings], (0, 2, 1))
    ctx = jnp.transpose(ctx_f32[:, :, :model.num_context], (0, 2, 1))
    return emb, ctx


# -----------------------------------------------------------------------------
# ConvCPC
# -----------------------------------------------------------------------------
class ConvCPC:
    def __init__(self, num_features, num_embeddings, num_context, num_ahead,
                 num_ahead_subsampling, subsample_length, embedder_params,
                 contexter_params, key):
        self.num_features = num_features
        self.num_embeddings = num_embeddings
        self.num_context = num_context
        self.num_ahead = num_ahead
        self.num_ahead_subsampling = num_ahead_subsampling
        self.subsample_length = subsample_length

        # TODO(synk): exact Embedder/Contexter layer stacks are not in the reference
        #             snippet; a 'valid' Conv1d stack with ReLU between layers is assumed.
        e_hidden = embedder_params["num_hidden"]
        e_layers = embedder_params["num_layers"]
        self.k_emb = embedder_params["kernel_size"]
        c_hidden = contexter_params["num_hidden"]
        c_layers = contexter_params["num_layers"]
        self.k_ctx = contexter_params["kernel_size"]

        emb_channels = [num_features] + [e_hidden] * (e_layers - 1) + [num_embeddings]
        ctx_channels = [num_embeddings] + [c_hidden] * (c_layers - 1) + [num_context]

        k_embd, k_ctxr, k_proj = jax.random.split(key, 3)
        self.embedder_raw = _make_conv_stack(k_embd, emb_channels, self.k_emb)
        self.contexter_raw = _make_conv_stack(k_ctxr, ctx_channels, self.k_ctx)

        # Lane-dense internal channel width (multiple of 128).
        self.c_pad = _round_up(max(emb_channels + ctx_channels), LANE)
        self.we, self.be = _pack_stack(self.embedder_raw, self.c_pad)
        self.wc, self.bc = _pack_stack(self.contexter_raw, self.c_pad)

        # Linear projections (used by cpc_loss, not by forward) — kept for parity.
        n_proj = num_ahead // num_ahead_subsampling
        std = math.sqrt(2.0 / num_embeddings)
        self.projections = [
            std * jax.random.normal(jax.random.fold_in(k_proj, i),
                                    (num_embeddings, num_context), jnp.float32)
            for i in range(n_proj)
        ]

        # get_crops() computed analytically (valid convs shrink length by a constant).
        self.emb_reduction = (self.k_emb - 1) * e_layers
        self.ctx_reduction = (self.k_ctx - 1) * c_layers
        self.crop_post = self.emb_reduction // 2
        self.crop_pre = self.emb_reduction // 2 + self.ctx_reduction

    def _pick_batch_group(self, batch, t_emb):
        # Fill the MXU row tile: aim for bt * T_out >= ~256 (v6e/v7x M tile), but
        # keep >=2 "parallel" grid steps (v7x megacore) whenever that still leaves
        # >=128 rows per matmul (v5e M tile).
        rows = max(t_emb, 1)
        bt = max(1, min(batch, _cdiv(256, rows)))
        bt_128 = max(1, _cdiv(128, rows))
        if batch // bt < 2 and batch >= 2 * bt_128:
            bt = bt_128
        return bt

    def _fused_call(self, x_ntc, bt):
        B_pad, t_in, c_in = x_ntc.shape
        t_emb = t_in - self.emb_reduction
        t_ctx = t_emb + self.crop_pre - self.ctx_reduction
        n_emb = self.we.shape[0]
        n_ctx = self.wc.shape[0]
        c_pad = self.c_pad

        kernel = functools.partial(
            _convcpc_fused_kernel, k_emb=self.k_emb, k_ctx=self.k_ctx,
            crop_pre=self.crop_pre, c_emb=self.num_embeddings,
            c_ctx=self.num_context)

        return pl.pallas_call(
            kernel,
            out_shape=(
                jax.ShapeDtypeStruct((B_pad, self.num_embeddings, t_emb), jnp.float32),
                jax.ShapeDtypeStruct((B_pad, self.num_context, t_ctx), jnp.float32),
            ),
            grid=(B_pad // bt,),
            in_specs=[
                # Un-padded input: only the C_in real channels are streamed from HBM.
                pl.BlockSpec((bt, t_in, c_in), lambda g: (g, 0, 0)),
                # Weights/biases: constant block index -> DMA'd once, VMEM-resident
                # across grid steps.  (pl.Buffered(1) would reclaim the second
                # pipeline buffer; at a few hundred KB it is not worth it here.)
                pl.BlockSpec((n_emb, self.k_emb * c_pad, c_pad), lambda g: (0, 0, 0)),
                pl.BlockSpec((n_emb, 1, c_pad), lambda g: (0, 0, 0)),
                pl.BlockSpec((n_ctx, self.k_ctx * c_pad, c_pad), lambda g: (0, 0, 0)),
                pl.BlockSpec((n_ctx, 1, c_pad), lambda g: (0, 0, 0)),
            ],
            out_specs=(
                # NCW, real channels only — no XLA slice/transpose epilogue needed.
                pl.BlockSpec((bt, self.num_embeddings, t_emb), lambda g: (g, 0, 0)),
                pl.BlockSpec((bt, self.num_context, t_ctx), lambda g: (g, 0, 0)),
            ),
            compiler_params=pltpu.CompilerParams(
                dimension_semantics=("parallel",),       # batch groups -> v7x megacore
                vmem_limit_bytes=32 * 1024 * 1024,       # raises v5e's 16 MiB default
            ),
        )(x_ntc, self.we, self.be, self.wc, self.bc)

    def forward(self, X_ncw):
        """X_ncw: (batch, num_features, time) NCW like the PyTorch module.

        Returns (X_emb, X_ctx) in NCW, produced directly by the kernel."""
        B, c_in, T = X_ncw.shape
        t_emb = T - self.emb_reduction
        bt = self._pick_batch_group(B, t_emb)
        B_pad = _round_up(B, bt)
        # Tiny one-shot layout prep: NCW -> (batch, time, real channels).
        x = jnp.transpose(X_ncw, (0, 2, 1))
        if B_pad > B:
            x = jnp.pad(x, ((0, B_pad - B), (0, 0), (0, 0)))
        X_emb, X_ctx = self._fused_call(x, bt)
        return X_emb[:B], X_ctx[:B]


if __name__ == "__main__":
    key = jax.random.PRNGKey(0)
    k_model, k_data = jax.random.split(key)

    num_features, num_embeddings, num_context = 4, 32, 32
    batch, time = 2, 64

    model = ConvCPC(
        num_features=num_features,
        num_embeddings=num_embeddings,
        num_context=num_context,
        num_ahead=8,
        num_ahead_subsampling=2,
        subsample_length=time,
        embedder_params=dict(num_hidden=32, num_layers=3, kernel_size=3),
        contexter_params=dict(num_hidden=32, num_layers=2, kernel_size=3),
        key=k_model,
    )

    X = jax.random.normal(k_data, (batch, num_features, time), dtype=jnp.float32)

    fwd = jax.jit(model.forward)
    X_emb, X_ctx = fwd(X)
    jax.block_until_ready((X_emb, X_ctx))

    # Shape checks implied by the PyTorch forward (valid convs + crop_pre zero pad).
    t_emb = time - model.emb_reduction
    t_ctx = t_emb + model.crop_pre - model.ctx_reduction
    assert X_emb.shape == (batch, num_embeddings, t_emb), X_emb.shape
    assert X_ctx.shape == (batch, num_context, t_ctx), X_ctx.shape
    assert bool(jnp.all(jnp.isfinite(X_emb))) and bool(jnp.all(jnp.isfinite(X_ctx)))

    # (a) Numerics-matched reference (same bf16 weights/activations, f32 accum):
    #     tight tolerance -> catches packing/indexing/layout bugs.
    emb_bf, ctx_bf = forward_ref_bf16(model, X)
    scale = float(jnp.maximum(jnp.max(jnp.abs(emb_bf)), jnp.max(jnp.abs(ctx_bf))))
    tight = 1e-2 * max(1.0, scale)
    err_e = float(jnp.max(jnp.abs(X_emb - emb_bf)))
    err_c = float(jnp.max(jnp.abs(X_ctx - ctx_bf)))
    assert err_e < tight and err_c < tight, (err_e, err_c, tight)

    # (b) Full-f32 reference: loose tolerance, covers the bf16 rounding of the kernel.
    emb_f32_ref, ctx_f32_ref = forward_ref_f32(model, X)
    loose = 0.1 * max(1.0, scale)
    assert float(jnp.max(jnp.abs(X_emb - emb_f32_ref))) < loose
    assert float(jnp.max(jnp.abs(X_ctx - ctx_f32_ref))) < loose

    print("KERNEL_OK")
</pallas_src>

<mosaic_0001>
module attributes {stable_mosaic.version = 11 : i64} {
  func.func @_convcpc_fused_kernel(%arg0: i32, %arg1: memref<2x64x4xf32, #tpu.memory_space<vmem>>, %arg2: memref<3x384x128xbf16, #tpu.memory_space<vmem>>, %arg3: memref<3x1x128xf32, #tpu.memory_space<vmem>>, %arg4: memref<2x384x128xbf16, #tpu.memory_space<vmem>>, %arg5: memref<2x1x128xf32, #tpu.memory_space<vmem>>, %arg6: memref<2x32x58xf32, #tpu.memory_space<vmem>>, %arg7: memref<2x32x61xf32, #tpu.memory_space<vmem>>) attributes {dimension_semantics = [#tpu.dimension_semantics<parallel>], iteration_bounds = array<i64: 1>, scalar_prefetch = 0 : i64, scratch_operands = 0 : i64, tpu.core_type = #tpu.core_type<tc>, window_params = [{transform_indices = @transform_0, window_bounds = array<i64: 2, 64, 4>}, {pipeline_mode = #tpu.pipeline_mode<synchronous>, transform_indices = @transform_1, window_bounds = array<i64: 3, 384, 128>}, {pipeline_mode = #tpu.pipeline_mode<synchronous>, transform_indices = @transform_2, window_bounds = array<i64: 3, 1, 128>}, {pipeline_mode = #tpu.pipeline_mode<synchronous>, transform_indices = @transform_3, window_bounds = array<i64: 2, 384, 128>}, {pipeline_mode = #tpu.pipeline_mode<synchronous>, transform_indices = @transform_4, window_bounds = array<i64: 2, 1, 128>}, {transform_indices = @transform_5, window_bounds = array<i64: 2, 32, 58>}, {transform_indices = @transform_6, window_bounds = array<i64: 2, 32, 61>}]} {
    %cst = arith.constant 0.000000e+00 : bf16
    %0 = vector.broadcast %cst : bf16 to vector<64x124xbf16>
    %c0 = arith.constant 0 : index
    %c0_0 = arith.constant 0 : index
    %c0_1 = arith.constant 0 : index
    %1 = vector.load %arg1[%c0, %c0_0, %c0_1] : memref<2x64x4xf32, #tpu.memory_space<vmem>>, vector<2x64x4xf32>
    %2 = vector.extract_strided_slice %1 {offsets = [0, 0, 0], sizes = [1, 64, 4], strides = [1, 1, 1]} : vector<2x64x4xf32> to vector<1x64x4xf32>
    %3 = vector.shape_cast %2 : vector<1x64x4xf32> to vector<64x4xf32>
    %4 = arith.truncf %3 : vector<64x4xf32> to vector<64x4xbf16>
    %5 = tpu.concatenate %4, %0 in 1 : vector<64x4xbf16>, vector<64x124xbf16> -> vector<64x128xbf16>
    %6 = vector.extract_strided_slice %1 {offsets = [1, 0, 0], sizes = [1, 64, 4], strides = [1, 1, 1]} : vector<2x64x4xf32> to vector<1x64x4xf32>
    %7 = vector.shape_cast %6 : vector<1x64x4xf32> to vector<64x4xf32>
    %8 = arith.truncf %7 : vector<64x4xf32> to vector<64x4xbf16>
    %9 = tpu.concatenate %8, %0 in 1 : vector<64x4xbf16>, vector<64x124xbf16> -> vector<64x128xbf16>
    %10 = vector.extract_strided_slice %5 {offsets = [0, 0], sizes = [62, 128], strides = [1, 1]} : vector<64x128xbf16> to vector<62x128xbf16>
    %11 = vector.extract_strided_slice %5 {offsets = [1, 0], sizes = [62, 128], strides = [1, 1]} : vector<64x128xbf16> to vector<62x128xbf16>
    %12 = vector.extract_strided_slice %5 {offsets = [2, 0], sizes = [62, 128], strides = [1, 1]} : vector<64x128xbf16> to vector<62x128xbf16>
    %13 = tpu.concatenate %10, %11, %12 in 1 : vector<62x128xbf16>, vector<62x128xbf16>, vector<62x128xbf16> -> vector<62x384xbf16>
    %14 = vector.extract_strided_slice %9 {offsets = [0, 0], sizes = [62, 128], strides = [1, 1]} : vector<64x128xbf16> to vector<62x128xbf16>
    %15 = vector.extract_strided_slice %9 {offsets = [1, 0], sizes = [62, 128], strides = [1, 1]} : vector<64x128xbf16> to vector<62x128xbf16>
    %16 = vector.extract_strided_slice %9 {offsets = [2, 0], sizes = [62, 128], strides = [1, 1]} : vector<64x128xbf16> to vector<62x128xbf16>
    %17 = tpu.concatenate %14, %15, %16 in 1 : vector<62x128xbf16>, vector<62x128xbf16>, vector<62x128xbf16> -> vector<62x384xbf16>
    %18 = tpu.concatenate %13, %17 in 0 : vector<62x384xbf16>, vector<62x384xbf16> -> vector<124x384xbf16>
    %c0_2 = arith.constant 0 : index
    %c0_3 = arith.constant 0 : index
    %c0_4 = arith.constant 0 : index
    %19 = vector.load %arg2[%c0_2, %c0_3, %c0_4] : memref<3x384x128xbf16, #tpu.memory_space<vmem>>, vector<1x384x128xbf16>
    %20 = vector.shape_cast %19 : vector<1x384x128xbf16> to vector<384x128xbf16>
    %cst_5 = arith.constant dense<0.000000e+00> : vector<124x128xf32>
    %21 = tpu.matmul %18, %20, %cst_5 {dimension_numbers = #tpu.dot_dimension_numbers<[1], [0], [0], [1], [0, 0, 1, 1], [], []>} : vector<124x384xbf16>, vector<384x128xbf16>, vector<124x128xf32> -> vector<124x128xf32>
    %c0_6 = arith.constant 0 : index
    %c0_7 = arith.constant 0 : index
    %c0_8 = arith.constant 0 : index
    %22 = vector.load %arg3[%c0_6, %c0_7, %c0_8] : memref<3x1x128xf32, #tpu.memory_space<vmem>>, vector<1x1x128xf32>
    %23 = vector.shape_cast %22 : vector<1x1x128xf32> to vector<1x128xf32>
    %24 = vector.broadcast %23 : vector<1x128xf32> to vector<124x128xf32>
    %25 = arith.addf %21, %24 : vector<124x128xf32>
    %cst_9 = arith.constant 0.000000e+00 : f32
    %26 = vector.broadcast %cst_9 : f32 to vector<124x128xf32>
    %27 = arith.maximumf %25, %26 : vector<124x128xf32>
    %28 = vector.extract_strided_slice %27 {offsets = [0, 0], sizes = [62, 128], strides = [1, 1]} : vector<124x128xf32> to vector<62x128xf32>
    %29 = vector.extract_strided_slice %27 {offsets = [62, 0], sizes = [62, 128], strides = [1, 1]} : vector<124x128xf32> to vector<62x128xf32>
    %30 = arith.truncf %28 : vector<62x128xf32> to vector<62x128xbf16>
    %31 = arith.truncf %29 : vector<62x128xf32> to vector<62x128xbf16>
    %32 = vector.extract_strided_slice %30 {offsets = [0, 0], sizes = [60, 128], strides = [1, 1]} : vector<62x128xbf16> to vector<60x128xbf16>
    %33 = vector.extract_strided_slice %30 {offsets = [1, 0], sizes = [60, 128], strides = [1, 1]} : vector<62x128xbf16> to vector<60x128xbf16>
    %34 = vector.extract_strided_slice %30 {offsets = [2, 0], sizes = [60, 128], strides = [1, 1]} : vector<62x128xbf16> to vector<60x128xbf16>
    %35 = tpu.concatenate %32, %33, %34 in 1 : vector<60x128xbf16>, vector<60x128xbf16>, vector<60x128xbf16> -> vector<60x384xbf16>
    %36 = vector.extract_strided_slice %31 {offsets = [0, 0], sizes = [60, 128], strides = [1, 1]} : vector<62x128xbf16> to vector<60x128xbf16>
    %37 = vector.extract_strided_slice %31 {offsets = [1, 0], sizes = [60, 128], strides = [1, 1]} : vector<62x128xbf16> to vector<60x128xbf16>
    %38 = vector.extract_strided_slice %31 {offsets = [2, 0], sizes = [60, 128], strides = [1, 1]} : vector<62x128xbf16> to vector<60x128xbf16>
    %39 = tpu.concatenate %36, %37, %38 in 1 : vector<60x128xbf16>, vector<60x128xbf16>, vector<60x128xbf16> -> vector<60x384xbf16>
    %40 = tpu.concatenate %35, %39 in 0 : vector<60x384xbf16>, vector<60x384xbf16> -> vector<120x384xbf16>
    %c1 = arith.constant 1 : index
    %c0_10 = arith.constant 0 : index
    %c0_11 = arith.constant 0 : index
    %41 = vector.load %arg2[%c1, %c0_10, %c0_11] : memref<3x384x128xbf16, #tpu.memory_space<vmem>>, vector<1x384x128xbf16>
    %42 = vector.shape_cast %41 : vector<1x384x128xbf16> to vector<384x128xbf16>
    %cst_12 = arith.constant dense<0.000000e+00> : vector<120x128xf32>
    %43 = tpu.matmul %40, %42, %cst_12 {dimension_numbers = #tpu.dot_dimension_numbers<[1], [0], [0], [1], [0, 0, 1, 1], [], []>} : vector<120x384xbf16>, vector<384x128xbf16>, vector<120x128xf32> -> vector<120x128xf32>
    %c1_13 = arith.constant 1 : index
    %c0_14 = arith.constant 0 : index
    %c0_15 = arith.constant 0 : index
    %44 = vector.load %arg3[%c1_13, %c0_14, %c0_15] : memref<3x1x128xf32, #tpu.memory_space<vmem>>, vector<1x1x128xf32>
    %45 = vector.shape_cast %44 : vector<1x1x128xf32> to vector<1x128xf32>
    %46 = vector.broadcast %45 : vector<1x128xf32> to vector<120x128xf32>
    %47 = arith.addf %43, %46 : vector<120x128xf32>
    %cst_16 = arith.constant 0.000000e+00 : f32
    %48 = vector.broadcast %cst_16 : f32 to vector<120x128xf32>
    %49 = arith.maximumf %47, %48 : vector<120x128xf32>
    %50 = vector.extract_strided_slice %49 {offsets = [0, 0], sizes = [60, 128], strides = [1, 1]} : vector<120x128xf32> to vector<60x128xf32>
    %51 = vector.extract_strided_slice %49 {offsets = [60, 0], sizes = [60, 128], strides = [1, 1]} : vector<120x128xf32> to vector<60x128xf32>
    %52 = arith.truncf %50 : vector<60x128xf32> to vector<60x128xbf16>
    %53 = arith.truncf %51 : vector<60x128xf32> to vector<60x128xbf16>
    %54 = vector.extract_strided_slice %52 {offsets = [0, 0], sizes = [58, 128], strides = [1, 1]} : vector<60x128xbf16> to vector<58x128xbf16>
    %55 = vector.extract_strided_slice %52 {offsets = [1, 0], sizes = [58, 128], strides = [1, 1]} : vector<60x128xbf16> to vector<58x128xbf16>
    %56 = vector.extract_strided_slice %52 {offsets = [2, 0], sizes = [58, 128], strides = [1, 1]} : vector<60x128xbf16> to vector<58x128xbf16>
    %57 = tpu.concatenate %54, %55, %56 in 1 : vector<58x128xbf16>, vector<58x128xbf16>, vector<58x128xbf16> -> vector<58x384xbf16>
    %58 = vector.extract_strided_slice %53 {offsets = [0, 0], sizes = [58, 128], strides = [1, 1]} : vector<60x128xbf16> to vector<58x128xbf16>
    %59 = vector.extract_strided_slice %53 {offsets = [1, 0], sizes = [58, 128], strides = [1, 1]} : vector<60x128xbf16> to vector<58x128xbf16>
    %60 = vector.extract_strided_slice %53 {offsets = [2, 0], sizes = [58, 128], strides = [1, 1]} : vector<60x128xbf16> to vector<58x128xbf16>
    %61 = tpu.concatenate %58, %59, %60 in 1 : vector<58x128xbf16>, vector<58x128xbf16>, vector<58x128xbf16> -> vector<58x384xbf16>
    %62 = tpu.concatenate %57, %61 in 0 : vector<58x384xbf16>, vector<58x384xbf16> -> vector<116x384xbf16>
    %c2 = arith.constant 2 : index
    %c0_17 = arith.constant 0 : index
    %c0_18 = arith.constant 0 : index
    %63 = vector.load %arg2[%c2, %c0_17, %c0_18] : memref<3x384x128xbf16, #tpu.memory_space<vmem>>, vector<1x384x128xbf16>
    %64 = vector.shape_cast %63 : vector<1x384x128xbf16> to vector<384x128xbf16>
    %cst_19 = arith.constant dense<0.000000e+00> : vector<116x128xf32>
    %65 = tpu.matmul %62, %64, %cst_19 {dimension_numbers = #tpu.dot_dimension_numbers<[1], [0], [0], [1], [0, 0, 1, 1], [], []>} : vector<116x384xbf16>, vector<384x128xbf16>, vector<116x128xf32> -> vector<116x128xf32>
    %c2_20 = arith.constant 2 : index
    %c0_21 = arith.constant 0 : index
    %c0_22 = arith.constant 0 : index
    %66 = vector.load %arg3[%c2_20, %c0_21, %c0_22] : memref<3x1x128xf32, #tpu.memory_space<vmem>>, vector<1x1x128xf32>
    %67 = vector.shape_cast %66 : vector<1x1x128xf32> to vector<1x128xf32>
    %68 = vector.broadcast %67 : vector<1x128xf32> to vector<116x128xf32>
    %69 = arith.addf %65, %68 : vector<116x128xf32>
    %70 = vector.extract_strided_slice %69 {offsets = [0, 0], sizes = [58, 128], strides = [1, 1]} : vector<116x128xf32> to vector<58x128xf32>
    %71 = vector.extract_strided_slice %69 {offsets = [58, 0], sizes = [58, 128], strides = [1, 1]} : vector<116x128xf32> to vector<58x128xf32>
    %72 = arith.truncf %70 : vector<58x128xf32> to vector<58x128xbf16>
    %73 = arith.truncf %71 : vector<58x128xf32> to vector<58x128xbf16>
    %74 = tpu.transpose %70, [1, 0] : vector<58x128xf32> -> vector<128x58xf32>
    %75 = vector.extract_strided_slice %74 {offsets = [0, 0], sizes = [32, 58], strides = [1, 1]} : vector<128x58xf32> to vector<32x58xf32>
    %c0_23 = arith.constant 0 : index
    %c0_24 = arith.constant 0 : index
    %c0_25 = arith.constant 0 : index
    %76 = vector.load %arg6[%c0_23, %c0_24, %c0_25] : memref<2x32x58xf32, #tpu.memory_space<vmem>>, vector<1x32x58xf32>
    %77 = vector.shape_cast %76 : vector<1x32x58xf32> to vector<32x58xf32>
    %78 = vector.shape_cast %75 : vector<32x58xf32> to vector<1x32x58xf32>
    tpu.vector_store %arg6[%c0_23, %c0_24, %c0_25], %78 {strides = array<i32>} : memref<2x32x58xf32, #tpu.memory_space<vmem>>, vector<1x32x58xf32>,
    %79 = tpu.transpose %71, [1, 0] : vector<58x128xf32> -> vector<128x58xf32>
    %80 = vector.extract_strided_slice %79 {offsets = [0, 0], sizes = [32, 58], strides = [1, 1]} : vector<128x58xf32> to vector<32x58xf32>
    %c1_26 = arith.constant 1 : index
    %c0_27 = arith.constant 0 : index
    %c0_28 = arith.constant 0 : index
    %81 = vector.load %arg6[%c1_26, %c0_27, %c0_28] : memref<2x32x58xf32, #tpu.memory_space<vmem>>, vector<1x32x58xf32>
    %82 = vector.shape_cast %81 : vector<1x32x58xf32> to vector<32x58xf32>
    %83 = vector.shape_cast %80 : vector<32x58xf32> to vector<1x32x58xf32>
    tpu.vector_store %arg6[%c1_26, %c0_27, %c0_28], %83 {strides = array<i32>} : memref<2x32x58xf32, #tpu.memory_space<vmem>>, vector<1x32x58xf32>,
    %cst_29 = arith.constant 0.000000e+00 : bf16
    %84 = vector.broadcast %cst_29 : bf16 to vector<7x128xbf16>
    %85 = tpu.concatenate %84, %72 in 0 : vector<7x128xbf16>, vector<58x128xbf16> -> vector<65x128xbf16>
    %86 = tpu.concatenate %84, %73 in 0 : vector<7x128xbf16>, vector<58x128xbf16> -> vector<65x128xbf16>
    %87 = vector.extract_strided_slice %85 {offsets = [0, 0], sizes = [63, 128], strides = [1, 1]} : vector<65x128xbf16> to vector<63x128xbf16>
    %88 = vector.extract_strided_slice %85 {offsets = [1, 0], sizes = [63, 128], strides = [1, 1]} : vector<65x128xbf16> to vector<63x128xbf16>
    %89 = vector.extract_strided_slice %85 {offsets = [2, 0], sizes = [63, 128], strides = [1, 1]} : vector<65x128xbf16> to vector<63x128xbf16>
    %90 = tpu.concatenate %87, %88, %89 in 1 : vector<63x128xbf16>, vector<63x128xbf16>, vector<63x128xbf16> -> vector<63x384xbf16>
    %91 = vector.extract_strided_slice %86 {offsets = [0, 0], sizes = [63, 128], strides = [1, 1]} : vector<65x128xbf16> to vector<63x128xbf16>
    %92 = vector.extract_strided_slice %86 {offsets = [1, 0], sizes = [63, 128], strides = [1, 1]} : vector<65x128xbf16> to vector<63x128xbf16>
    %93 = vector.extract_strided_slice %86 {offsets = [2, 0], sizes = [63, 128], strides = [1, 1]} : vector<65x128xbf16> to vector<63x128xbf16>
    %94 = tpu.concatenate %91, %92, %93 in 1 : vector<63x128xbf16>, vector<63x128xbf16>, vector<63x128xbf16> -> vector<63x384xbf16>
    %95 = tpu.concatenate %90, %94 in 0 : vector<63x384xbf16>, vector<63x384xbf16> -> vector<126x384xbf16>
    %c0_30 = arith.constant 0 : index
    %c0_31 = arith.constant 0 : index
    %c0_32 = arith.constant 0 : index
    %96 = vector.load %arg4[%c0_30, %c0_31, %c0_32] : memref<2x384x128xbf16, #tpu.memory_space<vmem>>, vector<1x384x128xbf16>
    %97 = vector.shape_cast %96 : vector<1x384x128xbf16> to vector<384x128xbf16>
    %cst_33 = arith.constant dense<0.000000e+00> : vector<126x128xf32>
    %98 = tpu.matmul %95, %97, %cst_33 {dimension_numbers = #tpu.dot_dimension_numbers<[1], [0], [0], [1], [0, 0, 1, 1], [], []>} : vector<126x384xbf16>, vector<384x128xbf16>, vector<126x128xf32> -> vector<126x128xf32>
    %c0_34 = arith.constant 0 : index
    %c0_35 = arith.constant 0 : index
    %c0_36 = arith.constant 0 : index
    %99 = vector.load %arg5[%c0_34, %c0_35, %c0_36] : memref<2x1x128xf32, #tpu.memory_space<vmem>>, vector<1x1x128xf32>
    %100 = vector.shape_cast %99 : vector<1x1x128xf32> to vector<1x128xf32>
    %101 = vector.broadcast %100 : vector<1x128xf32> to vector<126x128xf32>
    %102 = arith.addf %98, %101 : vector<126x128xf32>
    %cst_37 = arith.constant 0.000000e+00 : f32
    %103 = vector.broadcast %cst_37 : f32 to vector<126x128xf32>
    %104 = arith.maximumf %102, %103 : vector<126x128xf32>
    %105 = vector.extract_strided_slice %104 {offsets = [0, 0], sizes = [63, 128], strides = [1, 1]} : vector<126x128xf32> to vector<63x128xf32>
    %106 = vector.extract_strided_slice %104 {offsets = [63, 0], sizes = [63, 128], strides = [1, 1]} : vector<126x128xf32> to vector<63x128xf32>
    %107 = arith.truncf %105 : vector<63x128xf32> to vector<63x128xbf16>
    %108 = arith.truncf %106 : vector<63x128xf32> to vector<63x128xbf16>
    %109 = vector.extract_strided_slice %107 {offsets = [0, 0], sizes = [61, 128], strides = [1, 1]} : vector<63x128xbf16> to vector<61x128xbf16>
    %110 = vector.extract_strided_slice %107 {offsets = [1, 0], sizes = [61, 128], strides = [1, 1]} : vector<63x128xbf16> to vector<61x128xbf16>
    %111 = vector.extract_strided_slice %107 {offsets = [2, 0], sizes = [61, 128], strides = [1, 1]} : vector<63x128xbf16> to vector<61x128xbf16>
    %112 = tpu.concatenate %109, %110, %111 in 1 : vector<61x128xbf16>, vector<61x128xbf16>, vector<61x128xbf16> -> vector<61x384xbf16>
    %113 = vector.extract_strided_slice %108 {offsets = [0, 0], sizes = [61, 128], strides = [1, 1]} : vector<63x128xbf16> to vector<61x128xbf16>
    %114 = vector.extract_strided_slice %108 {offsets = [1, 0], sizes = [61, 128], strides = [1, 1]} : vector<63x128xbf16> to vector<61x128xbf16>
    %115 = vector.extract_strided_slice %108 {offsets = [2, 0], sizes = [61, 128], strides = [1, 1]} : vector<63x128xbf16> to vector<61x128xbf16>
    %116 = tpu.concatenate %113, %114, %115 in 1 : vector<61x128xbf16>, vector<61x128xbf16>, vector<61x128xbf16> -> vector<61x384xbf16>
    %117 = tpu.concatenate %112, %116 in 0 : vector<61x384xbf16>, vector<61x384xbf16> -> vector<122x384xbf16>
    %c1_38 = arith.constant 1 : index
    %c0_39 = arith.constant 0 : index
    %c0_40 = arith.constant 0 : index
    %118 = vector.load %arg4[%c1_38, %c0_39, %c0_40] : memref<2x384x128xbf16, #tpu.memory_space<vmem>>, vector<1x384x128xbf16>
    %119 = vector.shape_cast %118 : vector<1x384x128xbf16> to vector<384x128xbf16>
    %cst_41 = arith.constant dense<0.000000e+00> : vector<122x128xf32>
    %120 = tpu.matmul %117, %119, %cst_41 {dimension_numbers = #tpu.dot_dimension_numbers<[1], [0], [0], [1], [0, 0, 1, 1], [], []>} : vector<122x384xbf16>, vector<384x128xbf16>, vector<122x128xf32> -> vector<122x128xf32>
    %c1_42 = arith.constant 1 : index
    %c0_43 = arith.constant 0 : index
    %c0_44 = arith.constant 0 : index
    %121 = vector.load %arg5[%c1_42, %c0_43, %c0_44] : memref<2x1x128xf32, #tpu.memory_space<vmem>>, vector<1x1x128xf32>
    %122 = vector.shape_cast %121 : vector<1x1x128xf32> to vector<1x128xf32>
    %123 = vector.broadcast %122 : vector<1x128xf32> to vector<122x128xf32>
    %124 = arith.addf %120, %123 : vector<122x128xf32>
    %125 = vector.extract_strided_slice %124 {offsets = [0, 0], sizes = [61, 128], strides = [1, 1]} : vector<122x128xf32> to vector<61x128xf32>
    %126 = vector.extract_strided_slice %124 {offsets = [61, 0], sizes = [61, 128], strides = [1, 1]} : vector<122x128xf32> to vector<61x128xf32>
    %127 = tpu.transpose %125, [1, 0] : vector<61x128xf32> -> vector<128x61xf32>
    %128 = vector.extract_strided_slice %127 {offsets = [0, 0], sizes = [32, 61], strides = [1, 1]} : vector<128x61xf32> to vector<32x61xf32>
    %c0_45 = arith.constant 0 : index
    %c0_46 = arith.constant 0 : index
    %c0_47 = arith.constant 0 : index
    %129 = vector.load %arg7[%c0_45, %c0_46, %c0_47] : memref<2x32x61xf32, #tpu.memory_space<vmem>>, vector<1x32x61xf32>
    %130 = vector.shape_cast %129 : vector<1x32x61xf32> to vector<32x61xf32>
    %131 = vector.shape_cast %128 : vector<32x61xf32> to vector<1x32x61xf32>
    tpu.vector_store %arg7[%c0_45, %c0_46, %c0_47], %131 {strides = array<i32>} : memref<2x32x61xf32, #tpu.memory_space<vmem>>, vector<1x32x61xf32>,
    %132 = tpu.transpose %126, [1, 0] : vector<61x128xf32> -> vector<128x61xf32>
    %133 = vector.extract_strided_slice %132 {offsets = [0, 0], sizes = [32, 61], strides = [1, 1]} : vector<128x61xf32> to vector<32x61xf32>
    %c1_48 = arith.constant 1 : index
    %c0_49 = arith.constant 0 : index
    %c0_50 = arith.constant 0 : index
    %134 = vector.load %arg7[%c1_48, %c0_49, %c0_50] : memref<2x32x61xf32, #tpu.memory_space<vmem>>, vector<1x32x61xf32>
    %135 = vector.shape_cast %134 : vector<1x32x61xf32> to vector<32x61xf32>
    %136 = vector.shape_cast %133 : vector<32x61xf32> to vector<1x32x61xf32>
    tpu.vector_store %arg7[%c1_48, %c0_49, %c0_50], %136 {strides = array<i32>} : memref<2x32x61xf32, #tpu.memory_space<vmem>>, vector<1x32x61xf32>,
    return
  }
  func.func @transform_0(%arg0: i32) -> (i32, i32, i32) {
    %c0_i32 = arith.constant 0 : i32
    %c0_i32_0 = arith.constant 0 : i32
    %c0_i32_1 = arith.constant 0 : i32
    return %arg0, %c0_i32, %c0_i32_0 : i32, i32, i32
  }
  func.func @transform_1(%arg0: i32) -> (i32, i32, i32) {
    %c0_i32 = arith.constant 0 : i32
    %c0_i32_0 = arith.constant 0 : i32
    %c0_i32_1 = arith.constant 0 : i32
    %c0_i32_2 = arith.constant 0 : i32
    return %c0_i32, %c0_i32_0, %c0_i32_1 : i32, i32, i32
  }
  func.func @transform_2(%arg0: i32) -> (i32, i32, i32) {
    %c0_i32 = arith.constant 0 : i32
    %c0_i32_0 = arith.constant 0 : i32
    %c0_i32_1 = arith.constant 0 : i32
    %c0_i32_2 = arith.constant 0 : i32
    return %c0_i32, %c0_i32_0, %c0_i32_1 : i32, i32, i32
  }
  func.func @transform_3(%arg0: i32) -> (i32, i32, i32) {
    %c0_i32 = arith.constant 0 : i32
    %c0_i32_0 = arith.constant 0 : i32
    %c0_i32_1 = arith.constant 0 : i32
    %c0_i32_2 = arith.constant 0 : i32
    return %c0_i32, %c0_i32_0, %c0_i32_1 : i32, i32, i32
  }
  func.func @transform_4(%arg0: i32) -> (i32, i32, i32) {
    %c0_i32 = arith.constant 0 : i32
    %c0_i32_0 = arith.constant 0 : i32
    %c0_i32_1 = arith.constant 0 : i32
    %c0_i32_2 = arith.constant 0 : i32
    return %c0_i32, %c0_i32_0, %c0_i32_1 : i32, i32, i32
  }
  func.func @transform_5(%arg0: i32) -> (i32, i32, i32) {
    %c0_i32 = arith.constant 0 : i32
    %c0_i32_0 = arith.constant 0 : i32
    %c0_i32_1 = arith.constant 0 : i32
    return %arg0, %c0_i32, %c0_i32_0 : i32, i32, i32
  }
  func.func @transform_6(%arg0: i32) -> (i32, i32, i32) {
    %c0_i32 = arith.constant 0 : i32
    %c0_i32_0 = arith.constant 0 : i32
    %c0_i32_1 = arith.constant 0 : i32
    return %arg0, %c0_i32, %c0_i32_0 : i32, i32, i32
  }
}

</mosaic_0001>

<llo_original>
// kernel: forward.1
$region0: #{forward.1}
  #allocation0 [shape = 'u32[]', space=smem, size = 0x4, offset = 0x4, fixed_abs, tag = 'smem constant byte address 0x4 - core index']
  #allocation1 [shape = 'u32[144,128]{1,0:T(1,128)}', space=vmem, size = 0x12000, scoped, tag = 'internal scratch']
  %s0 = inlined_call_operand.vmem [shape: f32[2,64,4], index: 0, kind: input, shape index: {}]
  %s1 = inlined_call_operand.hbm [shape: bf16[3,384,128], index: 1, kind: input, shape index: {}]
  %s2 = inlined_call_operand.vmem [shape: f32[3,1,128], index: 2, kind: input, shape index: {}]
  %s3 = inlined_call_operand.hbm [shape: bf16[2,384,128], index: 3, kind: input, shape index: {}]
  %s4 = inlined_call_operand.vmem [shape: f32[2,1,128], index: 4, kind: input, shape index: {}]
  %s5 = inlined_call_operand.hbm [shape: f32[2,32,58], index: 5, kind: output, shape index: {0}]
  %s6 = inlined_call_operand.hbm [shape: f32[2,32,61], index: 6, kind: output, shape index: {1}]
  %7 = xla_tuple %s5, %s6
  %s8 = sld [smem:[#allocation0]]
  $region46: #{forward.1} parent=0
    _
  %s10 = ssub.s32 1, %s8
  %s11 = scalar_select 0, %s10, %s8
  $region1: #{forward.1} parent=0
    #allocation2 [shape = 'u8[294912]{0}', space=vmem, size = 0x48000, scoped, tag = 'input window, operand 1, single buffered']
    #allocation3 [shape = 's32[1]{0}', space=sflag, size = 0x4, scoped, tag = 'scoped memory for forward.1']
    #allocation4 [shape = 's32[1]{0}', space=sflag, size = 0x4, scoped, tag = 'scoped memory for forward.1']
    #allocation5 [shape = 'u8[196608]{0}', space=vmem, size = 0x30000, scoped, tag = 'input window, operand 3, single buffered']
    #allocation6 [shape = 's32[1]{0}', space=sflag, size = 0x4, scoped, tag = 'scoped memory for forward.1']
    #allocation7 [shape = 'u8[32768]{0}', space=vmem, size = 0x8000, scoped, tag = 'output window, operand 0, single buffered']
    #allocation8 [shape = 'u8[32768]{0}', space=vmem, size = 0x8000, scoped, tag = 'output window, operand 1, single buffered']
    #allocation9 [shape = 's32[1]{0}', space=sflag, size = 0x4, scoped, tag = 'scoped memory for forward.1']
    %12 = vsyncpa [#allocation3], 0
    %13 = vsyncpa [#allocation6], 0
    %14 = vsyncpa [#allocation4], 0
    %15 = vsyncpa [#allocation9], 0
    // Predicated region
    $region2: #{forward.1} parent=1 // pred_check
      _
    $region3: #{forward.1} parent=1 // pred_check_branch
      %17 = sbr.rel (0) target = $region5
    $region4: #{forward.1} parent=1 // pred_region
      _
    $region5: #{forward.1} parent=1 // pred_fallthru
      _
    // Predicated region
    $region6: #{forward.1} parent=1 // pred_check
      _
    $region7: #{forward.1} parent=1 // pred_check_branch
      %19 = sbr.rel (0) target = $region9
    $region8: #{forward.1} parent=1 // pred_region
      %s21 = ssub.s32 9216, 9216
      %22 = vsyncadd [#allocation3], %s21
      %s23 = sshll.u32 [#allocation2], 4
      %s24 = int_to_ptr.vmem [resolvable:$true] %s23
      %29 = dma.hbm_to_vmem [thread:$0]  %s1, 9216, %s24, [#allocation3], 64, 64, 4
    $region9: #{forward.1} parent=1 // pred_fallthru
      _
    // Predicated region
    $region10: #{forward.1} parent=1 // pred_check
      _
    $region11: #{forward.1} parent=1 // pred_check_branch
      %31 = sbr.rel (0) target = $region13
    $region12: #{forward.1} parent=1 // pred_region
      _
    $region13: #{forward.1} parent=1 // pred_fallthru
      _
    // Predicated region
    $region14: #{forward.1} parent=1 // pred_check
      _
    $region15: #{forward.1} parent=1 // pred_check_branch
      %33 = sbr.rel (0) target = $region17
    $region16: #{forward.1} parent=1 // pred_region
      %s35 = ssub.s32 6144, 6144
      %36 = vsyncadd [#allocation6], %s35
      %s37 = sshll.u32 [#allocation5], 4
      %s38 = int_to_ptr.vmem [resolvable:$true] %s37
      %43 = dma.hbm_to_vmem [thread:$0]  %s3, 6144, %s38, [#allocation6], 64, 64, 4
    $region17: #{forward.1} parent=1 // pred_fallthru
      _
    // Predicated region
    $region18: #{forward.1} parent=1 // pred_check
      _
    $region19: #{forward.1} parent=1 // pred_check_branch
      %45 = sbr.rel (0) target = $region21
    $region20: #{forward.1} parent=1 // pred_region
      _
    $region21: #{forward.1} parent=1 // pred_fallthru
      _
    // Predicated region
    $region22: #{forward.1} parent=1 // pred_check
      _
    $region23: #{forward.1} parent=1 // pred_check_branch
      %47 = sbr.rel (0) target = $region25
    $region24: #{forward.1} parent=1 // pred_region
      %48 = dma.done [#allocation3], 9216
    $region25: #{forward.1} parent=1 // pred_fallthru
      _
    // Predicated region
    $region26: #{forward.1} parent=1 // pred_check
      _
    $region27: #{forward.1} parent=1 // pred_check_branch
      %50 = sbr.rel (0) target = $region29
    $region28: #{forward.1} parent=1 // pred_region
      %51 = dma.done [#allocation6], 6144
    $region29: #{forward.1} parent=1 // pred_fallthru
      _
    %v53 = vld [vmem:[%s0] sm:$0xff]
    %v54 = vld [vmem:[%s0 + $0x8] sm:$0xff]
    %v55 = vld [vmem:[%s0 + $0x10] sm:$0xff]
    %v56 = vld [vmem:[%s0 + $0x18] sm:$0xff]
    %v57 = vld [vmem:[%s0 + $0x20] sm:$0xff]
    %v58 = vld [vmem:[%s0 + $0x28] sm:$0xff]
    %v59 = vld [vmem:[%s0 + $0x30] sm:$0xff]
    %v60 = vld [vmem:[%s0 + $0x38] sm:$0xff]
    %v61 = vld [vmem:[%s0 + $0x40] sm:$0xff]
    %v62 = vld [vmem:[%s0 + $0x48] sm:$0xff]
    %v63 = vld [vmem:[%s0 + $0x50] sm:$0xff]
    %v64 = vld [vmem:[%s0 + $0x58] sm:$0xff]
    %v65 = vld [vmem:[%s0 + $0x60] sm:$0xff]
    %v66 = vld [vmem:[%s0 + $0x68] sm:$0xff]
    %v67 = vld [vmem:[%s0 + $0x70] sm:$0xff]
    %v68 = vld [vmem:[%s0 + $0x78] sm:$0xff]
    %v69 = vpack.c.bf16 %v54, %v53
    %v70 = vpack.c.bf16 %v56, %v55
    %v71 = vpack.c.bf16 %v58, %v57
    %v72 = vpack.c.bf16 %v60, %v59
    %vm73 = vcmask 31744
    %v76 = vsel %vm73, %v69, 0
    %v79 = vsel %vm73, %v70, 0
    %v82 = vsel %vm73, %v71, 0
    %v85 = vsel %vm73, %v72, 0
    %v86 = vpack.c.bf16 %v62, %v61
    %v87 = vpack.c.bf16 %v64, %v63
    %v88 = vpack.c.bf16 %v66, %v65
    %v89 = vpack.c.bf16 %v68, %v67
    %v91 = vsel %vm73, %v86, 0
    %v93 = vsel %vm73, %v87, 0
    %v95 = vsel %vm73, %v88, 0
    %v97 = vsel %vm73, %v89, 0
    %vm98 = vsmask.f32 7424
    %v99 = vshrl.u32 %v76, 16
    %v101 = vshll.u32 %v76, 16
    %v103 = vrot.slane %v101, 1
    %v104 = vor.u32 %v99, %v103
    %v105 = vshll.u32 %v79, 16
    %v107 = vrot.slane %v105, 1
    %v108 = vsel %vm98, %v104, %v107
    %v109 = vshrl.u32 %v79, 16
    %v111 = vor.u32 %v109, %v107
    %v112 = vshll.u32 %v82, 16
    %v114 = vrot.slane %v112, 1
    %v115 = vsel %vm98, %v111, %v114
    %v116 = vshrl.u32 %v82, 16
    %v118 = vor.u32 %v116, %v114
    %v119 = vshll.u32 %v85, 16
    %v121 = vrot.slane %v119, 1
    %v122 = vsel %vm98, %v118, %v121
    %v123 = vshrl.u32 %v85, 16
    %v125 = vor.u32 %v123, %v121
    %vm133 = vcmask 1046528
    %v134 = vrot.slane %v76, 1
    %v135 = vrot.slane %v79, 1
    %v136 = vsel %vm133, %v134, %v135
    %v137 = vrot.slane %v82, 1
    %v138 = vsel %vm133, %v135, %v137
    %v139 = vrot.slane %v85, 1
    %v140 = vsel %vm133, %v137, %v139
    %v144 = vshrl.u32 %v91, 16
    %v146 = vshll.u32 %v91, 16
    %v148 = vrot.slane %v146, 1
    %v149 = vor.u32 %v144, %v148
    %v150 = vshll.u32 %v93, 16
    %v152 = vrot.slane %v150, 1
    %v153 = vsel %vm98, %v149, %v152
    %v154 = vshrl.u32 %v93, 16
    %v156 = vor.u32 %v154, %v152
    %v157 = vshll.u32 %v95, 16
    %v159 = vrot.slane %v157, 1
    %v160 = vsel %vm98, %v156, %v159
    %v161 = vshrl.u32 %v95, 16
    %v163 = vor.u32 %v161, %v159
    %v164 = vshll.u32 %v97, 16
    %v166 = vrot.slane %v164, 1
    %v167 = vsel %vm98, %v163, %v166
    %v168 = vshrl.u32 %v97, 16
    %v170 = vor.u32 %v168, %v166
    %v175 = vrot.slane %v91, 1
    %v176 = vrot.slane %v93, 1
    %v177 = vsel %vm133, %v175, %v176
    %v178 = vrot.slane %v95, 1
    %v179 = vsel %vm133, %v176, %v178
    %v180 = vrot.slane %v97, 1
    %v181 = vsel %vm133, %v178, %v180
    %v182 = vrot.slane %v153, 1
    %v183 = vrot.slane %v177, 1
    %v184 = vrot.slane %v160, 1
    %v185 = vsel %vm133, %v182, %v184
    %v186 = vrot.slane %v179, 1
    %v187 = vsel %vm133, %v183, %v186
    %v188 = vrot.slane %v167, 1
    %v189 = vsel %vm133, %v184, %v188
    %v190 = vrot.slane %v181, 1
    %v191 = vsel %vm133, %v186, %v190
    %v192 = vrot.slane %v170, 1
    %v193 = vsel %vm133, %v188, %v192
    %v194 = vrot.slane %v180, 1
    %v195 = vsel %vm133, %v190, %v194
    %vm208 = vcmask 1046528
    %v210 = vsel %vm208, %v85, %v175
    %v214 = vsel %vm208, %v125, %v182
    %v218 = vsel %vm208, %v139, %v183
    %v220 = vld [vmem:[#allocation2] sm:$0xf]
    %v221 = vld [vmem:[#allocation2 + $0x4] sm:$0xf]
    %v222 = vld [vmem:[#allocation2 + $0x8] sm:$0xf]
    %v223 = vld [vmem:[#allocation2 + $0xc] sm:$0xf]
    %v224 = vld [vmem:[#allocation2 + $0x10] sm:$0xf]
    %v225 = vld [vmem:[#allocation2 + $0x14] sm:$0xf]
    %v226 = vld [vmem:[#allocation2 + $0x18] sm:$0xf]
    %v227 = vld [vmem:[#allocation2 + $0x1c] sm:$0xf]
    %v228 = vld [vmem:[#allocation2 + $0x20] sm:$0xf]
    %v229 = vld [vmem:[#allocation2 + $0x24] sm:$0xf]
    %v230 = vld [vmem:[#allocation2 + $0x28] sm:$0xf]
    %v231 = vld [vmem:[#allocation2 + $0x2c] sm:$0xf]
    %v232 = vld [vmem:[#allocation2 + $0x30] sm:$0xf]
    %v233 = vld [vmem:[#allocation2 + $0x34] sm:$0xf]
    %v234 = vld [vmem:[#allocation2 + $0x38] sm:$0xf]
    %v235 = vld [vmem:[#allocation2 + $0x3c] sm:$0xf]
    %v236 = vld [vmem:[#allocation2 + $0x40] sm:$0xf]
    %v237 = vld [vmem:[#allocation2 + $0x44] sm:$0xf]
    %v238 = vld [vmem:[#allocation2 + $0x48] sm:$0xf]
    %v239 = vld [vmem:[#allocation2 + $0x4c] sm:$0xf]
    %v240 = vld [vmem:[#allocation2 + $0x50] sm:$0xf]
    %v241 = vld [vmem:[#allocation2 + $0x54] sm:$0xf]
    %v242 = vld [vmem:[#allocation2 + $0x58] sm:$0xf]
    %v243 = vld [vmem:[#allocation2 + $0x5c] sm:$0xf]
    %v244 = vld [vmem:[#allocation2 + $0x60] sm:$0xf]
    %v245 = vld [vmem:[#allocation2 + $0x64] sm:$0xf]
    %v246 = vld [vmem:[#allocation2 + $0x68] sm:$0xf]
    %v247 = vld [vmem:[#allocation2 + $0x6c] sm:$0xf]
    %v248 = vld [vmem:[#allocation2 + $0x70] sm:$0xf]
    %v249 = vld [vmem:[#allocation2 + $0x74] sm:$0xf]
    %v250 = vld [vmem:[#allocation2 + $0x78] sm:$0xf]
    %v251 = vld [vmem:[#allocation2 + $0x7c] sm:$0xf]
    %v252 = vld [vmem:[#allocation2 + $0x80] sm:$0xf]
    %v253 = vld [vmem:[#allocation2 + $0x84] sm:$0xf]
    %v254 = vld [vmem:[#allocation2 + $0x88] sm:$0xf]
    %v255 = vld [vmem:[#allocation2 + $0x8c] sm:$0xf]
    %v256 = vld [vmem:[#allocation2 + $0x90] sm:$0xf]
    %v257 = vld [vmem:[#allocation2 + $0x94] sm:$0xf]
    %v258 = vld [vmem:[#allocation2 + $0x98] sm:$0xf]
    %v259 = vld [vmem:[#allocation2 + $0x9c] sm:$0xf]
    %v260 = vld [vmem:[#allocation2 + $0xa0] sm:$0xf]
    %v261 = vld [vmem:[#allocation2 + $0xa4] sm:$0xf]
    %v262 = vld [vmem:[#allocation2 + $0xa8] sm:$0xf]
    %v263 = vld [vmem:[#allocation2 + $0xac] sm:$0xf]
    %v264 = vld [vmem:[#allocation2 + $0xb0] sm:$0xf]
    %v265 = vld [vmem:[#allocation2 + $0xb4] sm:$0xf]
    %v266 = vld [vmem:[#allocation2 + $0xb8] sm:$0xf]
    %v267 = vld [vmem:[#allocation2 + $0xbc] sm:$0xf]
    %v268 = vld [vmem:[%s2] sm:$0x1]
    %v270 = vlaneseq
    %v271 = vshrl.u32 %v270, 7
    %v272 = vsub.s32 0, %v271
    %v273 = vrot.slane %v268, %v272
    %v323 = vunpack.c.l.b16 %v220
    %v324 = vunpack.c.l.b16 %v221
    %v325 = vunpack.c.l.b16 %v222
    %v326 = vunpack.c.l.b16 %v223
    %v327 = vunpack.c.l.b16 %v224
    %v328 = vunpack.c.l.b16 %v225
    %v329 = vunpack.c.l.b16 %v226
    %v330 = vunpack.c.l.b16 %v227
    %v331 = vunpack.c.l.b16 %v228
    %v332 = vunpack.c.l.b16 %v229
    %v333 = vunpack.c.l.b16 %v230
    %v334 = vunpack.c.l.b16 %v231
    %v335 = vunpack.c.l.b16 %v232
    %v336 = vunpack.c.l.b16 %v233
    %v337 = vunpack.c.l.b16 %v234
    %v338 = vunpack.c.l.b16 %v235
    %v339 = vunpack.c.l.b16 %v236
    %v340 = vunpack.c.l.b16 %v237
    %v341 = vunpack.c.l.b16 %v238
    %v342 = vunpack.c.l.b16 %v239
    %v343 = vunpack.c.l.b16 %v240
    %v344 = vunpack.c.l.b16 %v241
    %v345 = vunpack.c.l.b16 %v242
    %v346 = vunpack.c.l.b16 %v243
    %v347 = vunpack.c.l.b16 %v244
    %v348 = vunpack.c.l.b16 %v245
    %v349 = vunpack.c.l.b16 %v246
    %v350 = vunpack.c.l.b16 %v247
    %v351 = vunpack.c.l.b16 %v248
    %v352 = vunpack.c.l.b16 %v249
    %v353 = vunpack.c.l.b16 %v250
    %v354 = vunpack.c.l.b16 %v251
    %v355 = vunpack.c.l.b16 %v252
    %v356 = vunpack.c.l.b16 %v253
    %v357 = vunpack.c.l.b16 %v254
    %v358 = vunpack.c.l.b16 %v255
    %v359 = vunpack.c.l.b16 %v256
    %v360 = vunpack.c.l.b16 %v257
    %v361 = vunpack.c.l.b16 %v258
    %v362 = vunpack.c.l.b16 %v259
    %v363 = vunpack.c.l.b16 %v260
    %v364 = vunpack.c.l.b16 %v261
    %v365 = vunpack.c.l.b16 %v262
    %v366 = vunpack.c.l.b16 %v263
    %v367 = vunpack.c.l.b16 %v264
    %v368 = vunpack.c.l.b16 %v265
    %v369 = vunpack.c.l.b16 %v266
    %v370 = vunpack.c.l.b16 %v267
    %v371 = vpack.c.b16 %v324, %v323
    %v372 = vpack.c.b16 %v326, %v325
    %v373 = vpack.c.b16 %v328, %v327
    %v374 = vpack.c.b16 %v330, %v329
    %v375 = vpack.c.b16 %v332, %v331
    %v376 = vpack.c.b16 %v334, %v333
    %v377 = vpack.c.b16 %v336, %v335
    %v378 = vpack.c.b16 %v338, %v337
    %v379 = vpack.c.b16 %v340, %v339
    %v380 = vpack.c.b16 %v342, %v341
    %v381 = vpack.c.b16 %v344, %v343
    %v382 = vpack.c.b16 %v346, %v345
    %v383 = vpack.c.b16 %v348, %v347
    %v384 = vpack.c.b16 %v350, %v349
    %v385 = vpack.c.b16 %v352, %v351
    %v386 = vpack.c.b16 %v354, %v353
    %v387 = vpack.c.b16 %v356, %v355
    %v388 = vpack.c.b16 %v358, %v357
    %v389 = vpack.c.b16 %v360, %v359
    %v390 = vpack.c.b16 %v362, %v361
    %v391 = vpack.c.b16 %v364, %v363
    %v392 = vpack.c.b16 %v366, %v365
    %v393 = vpack.c.b16 %v368, %v367
    %v394 = vpack.c.b16 %v370, %v369
    %419 = vmatprep.subr.bf16.mxu0 0
    %420 = vmatpush1.bf16.msra.mxu0 %v371
    %421 = vmatprep.subr.bf16.mxu0 0
    %422 = vmatpush1.bf16.msra.mxu0 %v372
    %423 = vmatprep.subr.bf16.mxu0 0
    %424 = vmatpush1.bf16.msra.mxu0 %v373
    %425 = vmatprep.subr.bf16.mxu0 0
    %426 = vmatpush1.bf16.msra.mxu0 %v374
    %427 = vmatprep.subr.bf16.mxu0 0
    %428 = vmatpush1.bf16.msra.mxu0 %v375
    %429 = vmatprep.subr.bf16.mxu0 0
    %430 = vmatpush1.bf16.msra.mxu0 %v376
    %431 = vmatprep.subr.bf16.mxu0 0
    %432 = vmatpush1.bf16.msra.mxu0 %v377
    %433 = vmatprep.subr.bf16.mxu0 0
    %434 = vmatpush1.bf16.msra.mxu0 %v378
    %435 = vmatprep.subr.bf16.mxu0 0
    %436 = vmatpush1.bf16.msra.mxu0 %v379
    %437 = vmatprep.subr.bf16.mxu0 0
    %438 = vmatpush1.bf16.msra.mxu0 %v380
    %439 = vmatprep.subr.bf16.mxu0 0
    %440 = vmatpush1.bf16.msra.mxu0 %v381
    %441 = vmatprep.subr.bf16.mxu0 0
    %442 = vmatpush1.bf16.msra.mxu0 %v382
    %443 = vmatprep.subr.bf16.mxu0 0
    %444 = vmatpush1.bf16.msra.mxu0 %v383
    %445 = vmatprep.subr.bf16.mxu0 0
    %446 = vmatpush1.bf16.msra.mxu0 %v384
    %447 = vmatprep.subr.bf16.mxu0 0
    %448 = vmatpush1.bf16.msra.mxu0 %v385
    %449 = vmatprep.subr.bf16.mxu0 0
    %450 = vmatpush1.bf16.msra.mxu0 %v386
    %451 = vmatprep.mubr.bf16.mxu0 %v108
    %452 = vmatmul.mubr.bf16.gmra.mrb[0].mxu0 %v76
    %v453 = vpop.f32.mrb[0].mxu0
    %v454 = vadd.f32 %v273, %v453
    %v455 = vpop.f32.mrb[0].mxu0
    %v456 = vpop.f32.mrb[0].mxu0
    %v457 = vadd.f32 %v273, %v456
    %v458 = vpop.f32.mrb[0].mxu0
    %459 = vmatprep.mubr.bf16.mxu0 %v115
    %460 = vmatmul.mubr.bf16.gmra.mrb[0].mxu0 %v79
    %v461 = vpop.f32.mrb[0].mxu0
    %v462 = vadd.f32 %v273, %v461
    %v463 = vpop.f32.mrb[0].mxu0
    %v464 = vpop.f32.mrb[0].mxu0
    %v465 = vadd.f32 %v273, %v464
    %v466 = vpop.f32.mrb[0].mxu0
    %467 = vmatprep.mubr.bf16.mxu0 %v122
    %468 = vmatmul.mubr.bf16.gmra.mrb[0].mxu0 %v82
    %v469 = vpop.f32.mrb[0].mxu0
    %v470 = vadd.f32 %v273, %v469
    %v471 = vpop.f32.mrb[0].mxu0
    %v472 = vpop.f32.mrb[0].mxu0
    %v473 = vadd.f32 %v273, %v472
    %v474 = vpop.f32.mrb[0].mxu0
    %475 = vmatprep.mubr.bf16.mxu0 %v214
    %476 = vmatmul.mubr.bf16.gmra.mrb[0].mxu0 %v210
    %v477 = vpop.f32.mrb[0].mxu0
    %v478 = vadd.f32 %v273, %v477
    %v479 = vpop.f32.mrb[0].mxu0
    %v480 = vpop.f32.mrb[0].mxu0
    %v481 = vadd.f32 %v273, %v480
    %v482 = vpop.f32.mrb[0].mxu0
    %483 = vmatprep.mubr.bf16.mxu0 %v185
    %484 = vmatmul.mubr.bf16.gmra.mrb[0].mxu0 %v177
    %v485 = vpop.f32.mrb[0].mxu0
    %v486 = vadd.f32 %v273, %v485
    %v487 = vpop.f32.mrb[0].mxu0
    %v488 = vpop.f32.mrb[0].mxu0
    %v489 = vadd.f32 %v273, %v488
    %v490 = vpop.f32.mrb[0].mxu0
    %491 = vmatprep.mubr.bf16.mxu0 %v189
    %492 = vmatmul.mubr.bf16.gmra.mrb[0].mxu0 %v179
    %v493 = vpop.f32.mrb[0].mxu0
    %v494 = vadd.f32 %v273, %v493
    %v495 = vpop.f32.mrb[0].mxu0
    %v496 = vpop.f32.mrb[0].mxu0
    %v497 = vadd.f32 %v273, %v496
    %v498 = vpop.f32.mrb[0].mxu0
    %499 = vmatprep.mubr.bf16.mxu0 %v193
    %500 = vmatmul.mubr.bf16.gmra.mrb[0].mxu0 %v181
    %v501 = vpop.f32.mrb[0].mxu0
    %v502 = vadd.f32 %v273, %v501
    %v503 = vpop.f32.mrb[0].mxu0
    %v504 = vpop.f32.mrb[0].mxu0
    %v505 = vadd.f32 %v273, %v504
    %v506 = vpop.f32.mrb[0].mxu0
    %507 = vmatprep.mubr.bf16.mxu0 %v192
    %508 = vmatmul.mubr.bf16.gmra.mrb[0].mxu0 %v180
    %v509 = vpop.f32.mrb[0].mxu0
    %v510 = vadd.f32 %v273, %v509
    %v511 = vpop.f32.mrb[0].mxu0
    %v512 = vpop.f32.mrb[0].mxu0
    %v513 = vadd.f32 %v273, %v512
    %v514 = vpop.f32.mrb[0].mxu0
    %515 = vdwg.mxu0
    %516 = vmatprep.subr.bf16.mxu0 0
    %517 = vmatpush1.bf16.msra.mxu0 %v387
    %518 = vmatprep.subr.bf16.mxu0 0
    %519 = vmatpush1.bf16.msra.mxu0 %v388
    %520 = vmatprep.subr.bf16.mxu0 0
    %521 = vmatpush1.bf16.msra.mxu0 %v389
    %522 = vmatprep.subr.bf16.mxu0 0
    %523 = vmatpush1.bf16.msra.mxu0 %v390
    %524 = vmatprep.subr.bf16.mxu0 0
    %525 = vmatpush1.bf16.msra.mxu0 %v391
    %526 = vmatprep.subr.bf16.mxu0 0
    %527 = vmatpush1.bf16.msra.mxu0 %v392
    %528 = vmatprep.subr.bf16.mxu0 0
    %529 = vmatpush1.bf16.msra.mxu0 %v393
    %530 = vmatprep.subr.bf16.mxu0 0
    %531 = vmatpush1.bf16.msra.mxu0 %v394
    %532 = vmatprep.subr.bf16.mxu0 0
    %533 = vmatpush1.bf16.msra.mxu0 0
    %534 = vmatprep.subr.bf16.mxu0 0
    %535 = vmatpush1.bf16.msra.mxu0 0
    %536 = vmatprep.subr.bf16.mxu0 0
    %537 = vmatpush1.bf16.msra.mxu0 0
    %538 = vmatprep.subr.bf16.mxu0 0
    %539 = vmatpush1.bf16.msra.mxu0 0
    %540 = vmatprep.subr.bf16.mxu0 0
    %541 = vmatpush1.bf16.msra.mxu0 0
    %542 = vmatprep.subr.bf16.mxu0 0
    %543 = vmatpush1.bf16.msra.mxu0 0
    %544 = vmatprep.subr.bf16.mxu0 0
    %545 = vmatpush1.bf16.msra.mxu0 0
    %546 = vmatprep.subr.bf16.mxu0 0
    %547 = vmatpush1.bf16.msra.mxu0 0
    %548 = vmatprep.mubr.bf16.mxu0 0
    %549 = vmatmul.mubr.bf16.gmra.mrb[0].mxu0 %v136
    %v550 = vpop.f32.mrb[0].mxu0
    %v551 = vadd.f32 %v454, %v550
    %v552 = vpop.f32.mrb[0].mxu0
    %v553 = vpop.f32.mrb[0].mxu0
    %v554 = vadd.f32 %v457, %v553
    %v555 = vpop.f32.mrb[0].mxu0
    %556 = vmatprep.mubr.bf16.mxu0 0
    %557 = vmatmul.mubr.bf16.gmra.mrb[0].mxu0 %v138
    %v558 = vpop.f32.mrb[0].mxu0
    %v559 = vadd.f32 %v462, %v558
    %v560 = vpop.f32.mrb[0].mxu0
    %v561 = vpop.f32.mrb[0].mxu0
    %v562 = vadd.f32 %v465, %v561
    %v563 = vpop.f32.mrb[0].mxu0
    %564 = vmatprep.mubr.bf16.mxu0 0
    %565 = vmatmul.mubr.bf16.gmra.mrb[0].mxu0 %v140
    %v566 = vpop.f32.mrb[0].mxu0
    %v567 = vadd.f32 %v470, %v566
    %v568 = vpop.f32.mrb[0].mxu0
    %v569 = vpop.f32.mrb[0].mxu0
    %v570 = vadd.f32 %v473, %v569
    %v571 = vpop.f32.mrb[0].mxu0
    %572 = vmatprep.mubr.bf16.mxu0 0
    %573 = vmatmul.mubr.bf16.gmra.mrb[0].mxu0 %v218
    %v574 = vpop.f32.mrb[0].mxu0
    %v575 = vadd.f32 %v478, %v574
    %v576 = vpop.f32.mrb[0].mxu0
    %v577 = vpop.f32.mrb[0].mxu0
    %v578 = vadd.f32 %v481, %v577
    %v579 = vpop.f32.mrb[0].mxu0
    %580 = vmatprep.mubr.bf16.mxu0 0
    %581 = vmatmul.mubr.bf16.gmra.mrb[0].mxu0 %v187
    %v582 = vpop.f32.mrb[0].mxu0
    %v583 = vadd.f32 %v486, %v582
    %v584 = vpop.f32.mrb[0].mxu0
    %v585 = vpop.f32.mrb[0].mxu0
    %v586 = vadd.f32 %v489, %v585
    %v587 = vpop.f32.mrb[0].mxu0
    %588 = vmatprep.mubr.bf16.mxu0 0
    %589 = vmatmul.mubr.bf16.gmra.mrb[0].mxu0 %v191
    %v590 = vpop.f32.mrb[0].mxu0
    %v591 = vadd.f32 %v494, %v590
    %v592 = vpop.f32.mrb[0].mxu0
    %v593 = vpop.f32.mrb[0].mxu0
    %v594 = vadd.f32 %v497, %v593
    %v595 = vpop.f32.mrb[0].mxu0
    %596 = vmatprep.mubr.bf16.mxu0 0
    %597 = vmatmul.mubr.bf16.gmra.mrb[0].mxu0 %v195
    %v598 = vpop.f32.mrb[0].mxu0
    %v599 = vadd.f32 %v502, %v598
    %v600 = vpop.f32.mrb[0].mxu0
    %v601 = vpop.f32.mrb[0].mxu0
    %v602 = vadd.f32 %v505, %v601
    %v603 = vpop.f32.mrb[0].mxu0
    %604 = vmatprep.mubr.bf16.mxu0 0
    %605 = vmatmul.mubr.bf16.gmra.mrb[0].mxu0 %v194
    %v606 = vpop.f32.mrb[0].mxu0
    %v607 = vadd.f32 %v510, %v606
    %v608 = vpop.f32.mrb[0].mxu0
    %v609 = vpop.f32.mrb[0].mxu0
    %v610 = vadd.f32 %v513, %v609
    %v611 = vpop.f32.mrb[0].mxu0
    %612 = vdwg.mxu0
    %v613 = vmax.f32 %v551, 0.0
    %v614 = vmax.f32 %v554, 0.0
    %v615 = vmax.f32 %v559, 0.0
    %v616 = vmax.f32 %v562, 0.0
    %v617 = vmax.f32 %v567, 0.0
    %v618 = vmax.f32 %v570, 0.0
    %v619 = vmax.f32 %v575, 0.0
    %v620 = vmax.f32 %v578, 0.0
    %v621 = vmax.f32 %v583, 0.0
    %v622 = vmax.f32 %v586, 0.0
    %v623 = vmax.f32 %v591, 0.0
    %v624 = vmax.f32 %v594, 0.0
    %v625 = vmax.f32 %v599, 0.0
    %v626 = vmax.f32 %v602, 0.0
    %v627 = vmax.f32 %v607, 0.0
    %v628 = vmax.f32 %v610, 0.0
    %v629 = vpack.c.bf16 %v614, %v613
    %v630 = vpack.c.bf16 %v616, %v615
    %v631 = vpack.c.bf16 %v618, %v617
    %v632 = vpack.c.bf16 %v620, %v619
    %v633 = vpack.c.bf16 %v621, %v620
    %v634 = vpack.c.bf16 %v623, %v622
    %v635 = vpack.c.bf16 %v625, %v624
    %v636 = vpack.c.bf16 %v627, %v626
    %v637 = vpack.c.bf16 %v628, %v628
    %v639 = vshrl.u32 %v629, 16
    %v641 = vshll.u32 %v629, 16
    %v643 = vrot.slane %v641, 1
    %v644 = vor.u32 %v639, %v643
    %v646 = vshll.u32 %v630, 16
    %v648 = vrot.slane %v646, 1
    %v649 = vsel %vm98, %v644, %v648
    %v650 = vshrl.u32 %v630, 16
    %v652 = vor.u32 %v650, %v648
    %v654 = vshll.u32 %v631, 16
    %v656 = vrot.slane %v654, 1
    %v657 = vsel %vm98, %v652, %v656
    %v658 = vshrl.u32 %v631, 16
    %v660 = vor.u32 %v658, %v656
    %v662 = vshll.u32 %v632, 16
    %v664 = vrot.slane %v662, 1
    %v665 = vsel %vm98, %v660, %v664
    %v666 = vshrl.u32 %v632, 16
    %v668 = vor.u32 %v666, %v664
    %v676 = vrot.slane %v629, 1
    %v677 = vrot.slane %v630, 1
    %v678 = vsel %vm133, %v676, %v677
    %v679 = vrot.slane %v631, 1
    %v680 = vsel %vm133, %v677, %v679
    %v681 = vrot.slane %v632, 1
    %v682 = vsel %vm133, %v679, %v681
    %v687 = vshrl.u32 %v633, 16
    %v689 = vshll.u32 %v633, 16
    %v691 = vrot.slane %v689, 1
    %v692 = vor.u32 %v687, %v691
    %v694 = vshll.u32 %v634, 16
    %v696 = vrot.slane %v694, 1
    %v697 = vsel %vm98, %v692, %v696
    %v698 = vshrl.u32 %v634, 16
    %v700 = vor.u32 %v698, %v696
    %v702 = vshll.u32 %v635, 16
    %v704 = vrot.slane %v702, 1
    %v705 = vsel %vm98, %v700, %v704
    %v706 = vshrl.u32 %v635, 16
    %v708 = vor.u32 %v706, %v704
    %v710 = vshll.u32 %v636, 16
    %v712 = vrot.slane %v710, 1
    %v713 = vsel %vm98, %v708, %v712
    %v714 = vshrl.u32 %v636, 16
    %v716 = vor.u32 %v714, %v712
    %v718 = vshll.u32 %v637, 16
    %v720 = vrot.slane %v718, 1
    %v721 = vsel %vm98, %v716, %v720
    %v722 = vshrl.u32 %v637, 16
    %v724 = vor.u32 %v722, %v720
    %v730 = vrot.slane %v633, 1
    %v731 = vrot.slane %v634, 1
    %v732 = vsel %vm133, %v730, %v731
    %v733 = vrot.slane %v635, 1
    %v734 = vsel %vm133, %v731, %v733
    %v735 = vrot.slane %v636, 1
    %v736 = vsel %vm133, %v733, %v735
    %v737 = vrot.slane %v637, 1
    %v738 = vsel %vm133, %v735, %v737
    %vm739 = vcmask 1042432
    %v740 = vrot.slane %v633, 5
    %v741 = vrot.slane %v697, 5
    %v742 = vrot.slane %v732, 5
    %v743 = vrot.slane %v634, 5
    %v744 = vsel %vm739, %v740, %v743
    %v745 = vrot.slane %v705, 5
    %v746 = vsel %vm739, %v741, %v745
    %v747 = vrot.slane %v734, 5
    %v748 = vsel %vm739, %v742, %v747
    %v749 = vrot.slane %v635, 5
    %v750 = vsel %vm739, %v743, %v749
    %v751 = vrot.slane %v713, 5
    %v752 = vsel %vm739, %v745, %v751
    %v753 = vrot.slane %v736, 5
    %v754 = vsel %vm739, %v747, %v753
    %v755 = vrot.slane %v636, 5
    %v756 = vsel %vm739, %v749, %v755
    %v757 = vrot.slane %v721, 5
    %v758 = vsel %vm739, %v751, %v757
    %v759 = vrot.slane %v738, 5
    %v760 = vsel %vm739, %v753, %v759
    %v761 = vrot.slane %v637, 5
    %v762 = vsel %vm739, %v755, %v761
    %v763 = vrot.slane %v724, 5
    %v764 = vsel %vm739, %v757, %v763
    %v765 = vrot.slane %v737, 5
    %v766 = vsel %vm739, %v759, %v765
    %vm779 = vcmask 1045504
    %v781 = vsel %vm779, %v632, %v740
    %v785 = vsel %vm779, %v668, %v741
    %v789 = vsel %vm779, %v681, %v742
    %s791 = scalar_lea.vmem [#allocation2], 192
    %v792 = vld [vmem:[%s791] sm:$0xf]
    %v793 = vld [vmem:[%s791 + $0x4] sm:$0xf]
    %v794 = vld [vmem:[%s791 + $0x8] sm:$0xf]
    %v795 = vld [vmem:[%s791 + $0xc] sm:$0xf]
    %v796 = vld [vmem:[%s791 + $0x10] sm:$0xf]
    %v797 = vld [vmem:[%s791 + $0x14] sm:$0xf]
    %v798 = vld [vmem:[%s791 + $0x18] sm:$0xf]
    %v799 = vld [vmem:[%s791 + $0x1c] sm:$0xf]
    %v800 = vld [vmem:[%s791 + $0x20] sm:$0xf]
    %v801 = vld [vmem:[%s791 + $0x24] sm:$0xf]
    %v802 = vld [vmem:[%s791 + $0x28] sm:$0xf]
    %v803 = vld [vmem:[%s791 + $0x2c] sm:$0xf]
    %v804 = vld [vmem:[%s791 + $0x30] sm:$0xf]
    %v805 = vld [vmem:[%s791 + $0x34] sm:$0xf]
    %v806 = vld [vmem:[%s791 + $0x38] sm:$0xf]
    %v807 = vld [vmem:[%s791 + $0x3c] sm:$0xf]
    %v808 = vld [vmem:[%s791 + $0x40] sm:$0xf]
    %v809 = vld [vmem:[%s791 + $0x44] sm:$0xf]
    %v810 = vld [vmem:[%s791 + $0x48] sm:$0xf]
    %v811 = vld [vmem:[%s791 + $0x4c] sm:$0xf]
    %v812 = vld [vmem:[%s791 + $0x50] sm:$0xf]
    %v813 = vld [vmem:[%s791 + $0x54] sm:$0xf]
    %v814 = vld [vmem:[%s791 + $0x58] sm:$0xf]
    %v815 = vld [vmem:[%s791 + $0x5c] sm:$0xf]
    %v816 = vld [vmem:[%s791 + $0x60] sm:$0xf]
    %v817 = vld [vmem:[%s791 + $0x64] sm:$0xf]
    %v818 = vld [vmem:[%s791 + $0x68] sm:$0xf]
    %v819 = vld [vmem:[%s791 + $0x6c] sm:$0xf]
    %v820 = vld [vmem:[%s791 + $0x70] sm:$0xf]
    %v821 = vld [vmem:[%s791 + $0x74] sm:$0xf]
    %v822 = vld [vmem:[%s791 + $0x78] sm:$0xf]
    %v823 = vld [vmem:[%s791 + $0x7c] sm:$0xf]
    %v824 = vld [vmem:[%s791 + $0x80] sm:$0xf]
    %v825 = vld [vmem:[%s791 + $0x84] sm:$0xf]
    %v826 = vld [vmem:[%s791 + $0x88] sm:$0xf]
    %v827 = vld [vmem:[%s791 + $0x8c] sm:$0xf]
    %v828 = vld [vmem:[%s791 + $0x90] sm:$0xf]
    %v829 = vld [vmem:[%s791 + $0x94] sm:$0xf]
    %v830 = vld [vmem:[%s791 + $0x98] sm:$0xf]
    %v831 = vld [vmem:[%s791 + $0x9c] sm:$0xf]
    %v832 = vld [vmem:[%s791 + $0xa0] sm:$0xf]
    %v833 = vld [vmem:[%s791 + $0xa4] sm:$0xf]
    %v834 = vld [vmem:[%s791 + $0xa8] sm:$0xf]
    %v835 = vld [vmem:[%s791 + $0xac] sm:$0xf]
    %v836 = vld [vmem:[%s791 + $0xb0] sm:$0xf]
    %v837 = vld [vmem:[%s791 + $0xb4] sm:$0xf]
    %v838 = vld [vmem:[%s791 + $0xb8] sm:$0xf]
    %v839 = vld [vmem:[%s791 + $0xbc] sm:$0xf]
    %s840 = scalar_lea.vmem %s2, 1
    %v841 = vld [vmem:[%s840] sm:$0x1]
    %v843 = vlaneseq
    %v844 = vshrl.u32 %v843, 7
    %v845 = vsub.s32 0, %v844
    %v846 = vrot.slane %v841, %v845
    %v896 = vunpack.c.l.b16 %v792
    %v897 = vunpack.c.l.b16 %v793
    %v898 = vunpack.c.l.b16 %v794
    %v899 = vunpack.c.l.b16 %v795
    %v900 = vunpack.c.l.b16 %v796
    %v901 = vunpack.c.l.b16 %v797
    %v902 = vunpack.c.l.b16 %v798
    %v903 = vunpack.c.l.b16 %v799
    %v904 = vunpack.c.l.b16 %v800
    %v905 = vunpack.c.l.b16 %v801
    %v906 = vunpack.c.l.b16 %v802
    %v907 = vunpack.c.l.b16 %v803
    %v908 = vunpack.c.l.b16 %v804
    %v909 = vunpack.c.l.b16 %v805
    %v910 = vunpack.c.l.b16 %v806
    %v911 = vunpack.c.l.b16 %v807
    %v912 = vunpack.c.l.b16 %v808
    %v913 = vunpack.c.l.b16 %v809
    %v914 = vunpack.c.l.b16 %v810
    %v915 = vunpack.c.l.b16 %v811
    %v916 = vunpack.c.l.b16 %v812
    %v917 = vunpack.c.l.b16 %v813
    %v918 = vunpack.c.l.b16 %v814
    %v919 = vunpack.c.l.b16 %v815
    %v920 = vunpack.c.l.b16 %v816
    %v921 = vunpack.c.l.b16 %v817
    %v922 = vunpack.c.l.b16 %v818
    %v923 = vunpack.c.l.b16 %v819
    %v924 = vunpack.c.l.b16 %v820
    %v925 = vunpack.c.l.b16 %v821
    %v926 = vunpack.c.l.b16 %v822
    %v927 = vunpack.c.l.b16 %v823
    %v928 = vunpack.c.l.b16 %v824
    %v929 = vunpack.c.l.b16 %v825
    %v930 = vunpack.c.l.b16 %v826
    %v931 = vunpack.c.l.b16 %v827
    %v932 = vunpack.c.l.b16 %v828
    %v933 = vunpack.c.l.b16 %v829
    %v934 = vunpack.c.l.b16 %v830
    %v935 = vunpack.c.l.b16 %v831
    %v936 = vunpack.c.l.b16 %v832
    %v937 = vunpack.c.l.b16 %v833
    %v938 = vunpack.c.l.b16 %v834
    %v939 = vunpack.c.l.b16 %v835
    %v940 = vunpack.c.l.b16 %v836
    %v941 = vunpack.c.l.b16 %v837
    %v942 = vunpack.c.l.b16 %v838
    %v943 = vunpack.c.l.b16 %v839
    %v944 = vpack.c.b16 %v897, %v896
    %v945 = vpack.c.b16 %v899, %v898
    %v946 = vpack.c.b16 %v901, %v900
    %v947 = vpack.c.b16 %v903, %v902
    %v948 = vpack.c.b16 %v905, %v904
    %v949 = vpack.c.b16 %v907, %v906
    %v950 = vpack.c.b16 %v909, %v908
    %v951 = vpack.c.b16 %v911, %v910
    %v952 = vpack.c.b16 %v913, %v912
    %v953 = vpack.c.b16 %v915, %v914
    %v954 = vpack.c.b16 %v917, %v916
    %v955 = vpack.c.b16 %v919, %v918
    %v956 = vpack.c.b16 %v921, %v920
    %v957 = vpack.c.b16 %v923, %v922
    %v958 = vpack.c.b16 %v925, %v924
    %v959 = vpack.c.b16 %v927, %v926
    %v960 = vpack.c.b16 %v929, %v928
    %v961 = vpack.c.b16 %v931, %v930
    %v962 = vpack.c.b16 %v933, %v932
    %v963 = vpack.c.b16 %v935, %v934
    %v964 = vpack.c.b16 %v937, %v936
    %v965 = vpack.c.b16 %v939, %v938
    %v966 = vpack.c.b16 %v941, %v940
    %v967 = vpack.c.b16 %v943, %v942
    %992 = vmatprep.subr.bf16.mxu0 0
    %993 = vmatpush1.bf16.msra.mxu0 %v944
    %994 = vmatprep.subr.bf16.mxu0 0
    %995 = vmatpush1.bf16.msra.mxu0 %v945
    %996 = vmatprep.subr.bf16.mxu0 0
    %997 = vmatpush1.bf16.msra.mxu0 %v946
    %998 = vmatprep.subr.bf16.mxu0 0
    %999 = vmatpush1.bf16.msra.mxu0 %v947
    %1000 = vmatprep.subr.bf16.mxu0 0
    %1001 = vmatpush1.bf16.msra.mxu0 %v948
    %1002 = vmatprep.subr.bf16.mxu0 0
    %1003 = vmatpush1.bf16.msra.mxu0 %v949
    %1004 = vmatprep.subr.bf16.mxu0 0
    %1005 = vmatpush1.bf16.msra.mxu0 %v950
    %1006 = vmatprep.subr.bf16.mxu0 0
    %1007 = vmatpush1.bf16.msra.mxu0 %v951
    %1008 = vmatprep.subr.bf16.mxu0 0
    %1009 = vmatpush1.bf16.msra.mxu0 %v952
    %1010 = vmatprep.subr.bf16.mxu0 0
    %1011 = vmatpush1.bf16.msra.mxu0 %v953
    %1012 = vmatprep.subr.bf16.mxu0 0
    %1013 = vmatpush1.bf16.msra.mxu0 %v954
    %1014 = vmatprep.subr.bf16.mxu0 0
    %1015 = vmatpush1.bf16.msra.mxu0 %v955
    %1016 = vmatprep.subr.bf16.mxu0 0
    %1017 = vmatpush1.bf16.msra.mxu0 %v956
    %1018 = vmatprep.subr.bf16.mxu0 0
    %1019 = vmatpush1.bf16.msra.mxu0 %v957
    %1020 = vmatprep.subr.bf16.mxu0 0
    %1021 = vmatpush1.bf16.msra.mxu0 %v958
    %1022 = vmatprep.subr.bf16.mxu0 0
    %1023 = vmatpush1.bf16.msra.mxu0 %v959
    %1024 = vmatprep.mubr.bf16.mxu0 %v649
    %1025 = vmatmul.mubr.bf16.gmra.mrb[0].mxu0 %v629
    %v1026 = vpop.f32.mrb[0].mxu0
    %v1027 = vadd.f32 %v846, %v1026
    %v1028 = vpop.f32.mrb[0].mxu0
    %v1029 = vpop.f32.mrb[0].mxu0
    %v1030 = vadd.f32 %v846, %v1029
    %v1031 = vpop.f32.mrb[0].mxu0
    %1032 = vmatprep.mubr.bf16.mxu0 %v657
    %1033 = vmatmul.mubr.bf16.gmra.mrb[0].mxu0 %v630
    %v1034 = vpop.f32.mrb[0].mxu0
    %v1035 = vadd.f32 %v846, %v1034
    %v1036 = vpop.f32.mrb[0].mxu0
    %v1037 = vpop.f32.mrb[0].mxu0
    %v1038 = vadd.f32 %v846, %v1037
    %v1039 = vpop.f32.mrb[0].mxu0
    %1040 = vmatprep.mubr.bf16.mxu0 %v665
    %1041 = vmatmul.mubr.bf16.gmra.mrb[0].mxu0 %v631
    %v1042 = vpop.f32.mrb[0].mxu0
    %v1043 = vadd.f32 %v846, %v1042
    %v1044 = vpop.f32.mrb[0].mxu0
    %v1045 = vpop.f32.mrb[0].mxu0
    %v1046 = vadd.f32 %v846, %v1045
    %v1047 = vpop.f32.mrb[0].mxu0
    %1048 = vmatprep.mubr.bf16.mxu0 %v785
    %1049 = vmatmul.mubr.bf16.gmra.mrb[0].mxu0 %v781
    %v1050 = vpop.f32.mrb[0].mxu0
    %v1051 = vadd.f32 %v846, %v1050
    %v1052 = vpop.f32.mrb[0].mxu0
    %v1053 = vpop.f32.mrb[0].mxu0
    %v1054 = vadd.f32 %v846, %v1053
    %v1055 = vpop.f32.mrb[0].mxu0
    %1056 = vmatprep.mubr.bf16.mxu0 %v746
    %1057 = vmatmul.mubr.bf16.gmra.mrb[0].mxu0 %v744
    %v1058 = vpop.f32.mrb[0].mxu0
    %v1059 = vadd.f32 %v846, %v1058
    %v1060 = vpop.f32.mrb[0].mxu0
    %v1061 = vpop.f32.mrb[0].mxu0
    %v1062 = vadd.f32 %v846, %v1061
    %v1063 = vpop.f32.mrb[0].mxu0
    %1064 = vmatprep.mubr.bf16.mxu0 %v752
    %1065 = vmatmul.mubr.bf16.gmra.mrb[0].mxu0 %v750
    %v1066 = vpop.f32.mrb[0].mxu0
    %v1067 = vadd.f32 %v846, %v1066
    %v1068 = vpop.f32.mrb[0].mxu0
    %v1069 = vpop.f32.mrb[0].mxu0
    %v1070 = vadd.f32 %v846, %v1069
    %v1071 = vpop.f32.mrb[0].mxu0
    %1072 = vmatprep.mubr.bf16.mxu0 %v758
    %1073 = vmatmul.mubr.bf16.gmra.mrb[0].mxu0 %v756
    %v1074 = vpop.f32.mrb[0].mxu0
    %v1075 = vadd.f32 %v846, %v1074
    %v1076 = vpop.f32.mrb[0].mxu0
    %v1077 = vpop.f32.mrb[0].mxu0
    %v1078 = vadd.f32 %v846, %v1077
    %v1079 = vpop.f32.mrb[0].mxu0
    %1080 = vmatprep.mubr.bf16.mxu0 %v764
    %1081 = vmatmul.mubr.bf16.gmra.mrb[0].mxu0 %v762
    %v1082 = vpop.f32.mrb[0].mxu0
    %v1083 = vadd.f32 %v846, %v1082
    %v1084 = vpop.f32.mrb[0].mxu0
    %v1085 = vpop.f32.mrb[0].mxu0
    %v1086 = vpop.f32.mrb[0].mxu0
    %1087 = vdwg.mxu0
    %1088 = vmatprep.subr.bf16.mxu0 0
    %1089 = vmatpush1.bf16.msra.mxu0 %v960
    %1090 = vmatprep.subr.bf16.mxu0 0
    %1091 = vmatpush1.bf16.msra.mxu0 %v961
    %1092 = vmatprep.subr.bf16.mxu0 0
    %1093 = vmatpush1.bf16.msra.mxu0 %v962
    %1094 = vmatprep.subr.bf16.mxu0 0
    %1095 = vmatpush1.bf16.msra.mxu0 %v963
    %1096 = vmatprep.subr.bf16.mxu0 0
    %1097 = vmatpush1.bf16.msra.mxu0 %v964
    %1098 = vmatprep.subr.bf16.mxu0 0
    %1099 = vmatpush1.bf16.msra.mxu0 %v965
    %1100 = vmatprep.subr.bf16.mxu0 0
    %1101 = vmatpush1.bf16.msra.mxu0 %v966
    %1102 = vmatprep.subr.bf16.mxu0 0
    %1103 = vmatpush1.bf16.msra.mxu0 %v967
    %1104 = vmatprep.subr.bf16.mxu0 0
    %1105 = vmatpush1.bf16.msra.mxu0 0
    %1106 = vmatprep.subr.bf16.mxu0 0
    %1107 = vmatpush1.bf16.msra.mxu0 0
    %1108 = vmatprep.subr.bf16.mxu0 0
    %1109 = vmatpush1.bf16.msra.mxu0 0
    %1110 = vmatprep.subr.bf16.mxu0 0
    %1111 = vmatpush1.bf16.msra.mxu0 0
    %1112 = vmatprep.subr.bf16.mxu0 0
    %1113 = vmatpush1.bf16.msra.mxu0 0
    %1114 = vmatprep.subr.bf16.mxu0 0
    %1115 = vmatpush1.bf16.msra.mxu0 0
    %1116 = vmatprep.subr.bf16.mxu0 0
    %1117 = vmatpush1.bf16.msra.mxu0 0
    %1118 = vmatprep.subr.bf16.mxu0 0
    %1119 = vmatpush1.bf16.msra.mxu0 0
    %1120 = vmatprep.mubr.bf16.mxu0 0
    %1121 = vmatmul.mubr.bf16.gmra.mrb[0].mxu0 %v678
    %v1122 = vpop.f32.mrb[0].mxu0
    %v1123 = vadd.f32 %v1027, %v1122
    %v1124 = vpop.f32.mrb[0].mxu0
    %v1125 = vpop.f32.mrb[0].mxu0
    %v1126 = vadd.f32 %v1030, %v1125
    %v1127 = vpop.f32.mrb[0].mxu0
    %1128 = vmatprep.mubr.bf16.mxu0 0
    %1129 = vmatmul.mubr.bf16.gmra.mrb[0].mxu0 %v680
    %v1130 = vpop.f32.mrb[0].mxu0
    %v1131 = vadd.f32 %v1035, %v1130
    %v1132 = vpop.f32.mrb[0].mxu0
    %v1133 = vpop.f32.mrb[0].mxu0
    %v1134 = vadd.f32 %v1038, %v1133
    %v1135 = vpop.f32.mrb[0].mxu0
    %1136 = vmatprep.mubr.bf16.mxu0 0
    %1137 = vmatmul.mubr.bf16.gmra.mrb[0].mxu0 %v682
    %v1138 = vpop.f32.mrb[0].mxu0
    %v1139 = vadd.f32 %v1043, %v1138
    %v1140 = vpop.f32.mrb[0].mxu0
    %v1141 = vpop.f32.mrb[0].mxu0
    %v1142 = vadd.f32 %v1046, %v1141
    %v1143 = vpop.f32.mrb[0].mxu0
    %1144 = vmatprep.mubr.bf16.mxu0 0
    %1145 = vmatmul.mubr.bf16.gmra.mrb[0].mxu0 %v789
    %v1146 = vpop.f32.mrb[0].mxu0
    %v1147 = vadd.f32 %v1051, %v1146
    %v1148 = vpop.f32.mrb[0].mxu0
    %v1149 = vpop.f32.mrb[0].mxu0
    %v1150 = vadd.f32 %v1054, %v1149
    %v1151 = vpop.f32.mrb[0].mxu0
    %1152 = vmatprep.mubr.bf16.mxu0 0
    %1153 = vmatmul.mubr.bf16.gmra.mrb[0].mxu0 %v748
    %v1154 = vpop.f32.mrb[0].mxu0
    %v1155 = vadd.f32 %v1059, %v1154
    %v1156 = vpop.f32.mrb[0].mxu0
    %v1157 = vpop.f32.mrb[0].mxu0
    %v1158 = vadd.f32 %v1062, %v1157
    %v1159 = vpop.f32.mrb[0].mxu0
    %1160 = vmatprep.mubr.bf16.mxu0 0
    %1161 = vmatmul.mubr.bf16.gmra.mrb[0].mxu0 %v754
    %v1162 = vpop.f32.mrb[0].mxu0
    %v1163 = vadd.f32 %v1067, %v1162
    %v1164 = vpop.f32.mrb[0].mxu0
    %v1165 = vpop.f32.mrb[0].mxu0
    %v1166 = vadd.f32 %v1070, %v1165
    %v1167 = vpop.f32.mrb[0].mxu0
    %1168 = vmatprep.mubr.bf16.mxu0 0
    %1169 = vmatmul.mubr.bf16.gmra.mrb[0].mxu0 %v760
    %v1170 = vpop.f32.mrb[0].mxu0
    %v1171 = vadd.f32 %v1075, %v1170
    %v1172 = vpop.f32.mrb[0].mxu0
    %v1173 = vpop.f32.mrb[0].mxu0
    %v1174 = vadd.f32 %v1078, %v1173
    %v1175 = vpop.f32.mrb[0].mxu0
    %1176 = vmatprep.mubr.bf16.mxu0 0
    %1177 = vmatmul.mubr.bf16.gmra.mrb[0].mxu0 %v766
    %v1178 = vpop.f32.mrb[0].mxu0
    %v1179 = vadd.f32 %v1083, %v1178
    %v1180 = vpop.f32.mrb[0].mxu0
    %v1181 = vpop.f32.mrb[0].mxu0
    %v1182 = vpop.f32.mrb[0].mxu0
    %1183 = vdwg.mxu0
    %v1184 = vmax.f32 %v1123, 0.0
    %v1185 = vmax.f32 %v1126, 0.0
    %v1186 = vmax.f32 %v1131, 0.0
    %v1187 = vmax.f32 %v1134, 0.0
    %v1188 = vmax.f32 %v1139, 0.0
    %v1189 = vmax.f32 %v1142, 0.0
    %v1190 = vmax.f32 %v1147, 0.0
    %v1191 = vmax.f32 %v1150, 0.0
    %v1192 = vmax.f32 %v1155, 0.0
    %v1193 = vmax.f32 %v1158, 0.0
    %v1194 = vmax.f32 %v1163, 0.0
    %v1195 = vmax.f32 %v1166, 0.0
    %v1196 = vmax.f32 %v1171, 0.0
    %v1197 = vmax.f32 %v1174, 0.0
    %v1198 = vmax.f32 %v1179, 0.0
    %v1199 = vpack.c.bf16 %v1185, %v1184
    %v1200 = vpack.c.bf16 %v1187, %v1186
    %v1201 = vpack.c.bf16 %v1189, %v1188
    %v1202 = vpack.c.bf16 %v1191, %v1190
    %v1203 = vpack.c.bf16 %v1192, %v1191
    %v1204 = vpack.c.bf16 %v1194, %v1193
    %v1205 = vpack.c.bf16 %v1196, %v1195
    %v1206 = vpack.c.bf16 %v1198, %v1197
    %v1208 = vshrl.u32 %v1199, 16
    %v1210 = vshll.u32 %v1199, 16
    %v1212 = vrot.slane %v1210, 1
    %v1213 = vor.u32 %v1208, %v1212
    %v1215 = vshll.u32 %v1200, 16
    %v1217 = vrot.slane %v1215, 1
    %v1218 = vsel %vm98, %v1213, %v1217
    %v1219 = vshrl.u32 %v1200, 16
    %v1221 = vor.u32 %v1219, %v1217
    %v1223 = vshll.u32 %v1201, 16
    %v1225 = vrot.slane %v1223, 1
    %v1226 = vsel %vm98, %v1221, %v1225
    %v1227 = vshrl.u32 %v1201, 16
    %v1229 = vor.u32 %v1227, %v1225
    %v1231 = vshll.u32 %v1202, 16
    %v1233 = vrot.slane %v1231, 1
    %v1234 = vsel %vm98, %v1229, %v1233
    %v1235 = vshrl.u32 %v1202, 16
    %v1237 = vor.u32 %v1235, %v1233
    %v1245 = vrot.slane %v1199, 1
    %v1246 = vrot.slane %v1200, 1
    %v1247 = vsel %vm133, %v1245, %v1246
    %v1248 = vrot.slane %v1201, 1
    %v1249 = vsel %vm133, %v1246, %v1248
    %v1250 = vrot.slane %v1202, 1
    %v1251 = vsel %vm133, %v1248, %v1250
    %v1256 = vshrl.u32 %v1203, 16
    %v1258 = vshll.u32 %v1203, 16
    %v1260 = vrot.slane %v1258, 1
    %v1261 = vor.u32 %v1256, %v1260
    %v1263 = vshll.u32 %v1204, 16
    %v1265 = vrot.slane %v1263, 1
    %v1266 = vsel %vm98, %v1261, %v1265
    %v1267 = vshrl.u32 %v1204, 16
    %v1269 = vor.u32 %v1267, %v1265
    %v1271 = vshll.u32 %v1205, 16
    %v1273 = vrot.slane %v1271, 1
    %v1274 = vsel %vm98, %v1269, %v1273
    %v1275 = vshrl.u32 %v1205, 16
    %v1277 = vor.u32 %v1275, %v1273
    %v1279 = vshll.u32 %v1206, 16
    %v1281 = vrot.slane %v1279, 1
    %v1282 = vsel %vm98, %v1277, %v1281
    %v1283 = vshrl.u32 %v1206, 16
    %v1285 = vor.u32 %v1283, %v1281
    %v1290 = vrot.slane %v1203, 1
    %v1291 = vrot.slane %v1204, 1
    %v1292 = vsel %vm133, %v1290, %v1291
    %v1293 = vrot.slane %v1205, 1
    %v1294 = vsel %vm133, %v1291, %v1293
    %v1295 = vrot.slane %v1206, 1
    %v1296 = vsel %vm133, %v1293, %v1295
    %v1297 = vrot.slane %v1203, 5
    %v1298 = vrot.slane %v1266, 5
    %v1299 = vrot.slane %v1292, 5
    %v1300 = vrot.slane %v1204, 5
    %v1301 = vsel %vm739, %v1297, %v1300
    %v1302 = vrot.slane %v1274, 5
    %v1303 = vsel %vm739, %v1298, %v1302
    %v1304 = vrot.slane %v1294, 5
    %v1305 = vsel %vm739, %v1299, %v1304
    %v1306 = vrot.slane %v1205, 5
    %v1307 = vsel %vm739, %v1300, %v1306
    %v1308 = vrot.slane %v1282, 5
    %v1309 = vsel %vm739, %v1302, %v1308
    %v1310 = vrot.slane %v1296, 5
    %v1311 = vsel %vm739, %v1304, %v1310
    %v1312 = vrot.slane %v1206, 5
    %v1313 = vsel %vm739, %v1306, %v1312
    %v1314 = vrot.slane %v1285, 5
    %v1315 = vsel %vm739, %v1308, %v1314
    %v1316 = vrot.slane %v1295, 5
    %v1317 = vsel %vm739, %v1310, %v1316
    %vm1330 = vcmask 1044480
    %v1332 = vsel %vm1330, %v1202, %v1297
    %v1336 = vsel %vm1330, %v1237, %v1298
    %v1340 = vsel %vm1330, %v1250, %v1299
    %s1342 = scalar_lea.vmem [#allocation2], 384
    %v1343 = vld [vmem:[%s1342] sm:$0xf]
    %v1344 = vld [vmem:[%s1342 + $0x4] sm:$0xf]
    %v1345 = vld [vmem:[%s1342 + $0x8] sm:$0xf]
    %v1346 = vld [vmem:[%s1342 + $0xc] sm:$0xf]
    %v1347 = vld [vmem:[%s1342 + $0x10] sm:$0xf]
    %v1348 = vld [vmem:[%s1342 + $0x14] sm:$0xf]
    %v1349 = vld [vmem:[%s1342 + $0x18] sm:$0xf]
    %v1350 = vld [vmem:[%s1342 + $0x1c] sm:$0xf]
    %v1351 = vld [vmem:[%s1342 + $0x20] sm:$0xf]
    %v1352 = vld [vmem:[%s1342 + $0x24] sm:$0xf]
    %v1353 = vld [vmem:[%s1342 + $0x28] sm:$0xf]
    %v1354 = vld [vmem:[%s1342 + $0x2c] sm:$0xf]
    %v1355 = vld [vmem:[%s1342 + $0x30] sm:$0xf]
    %v1356 = vld [vmem:[%s1342 + $0x34] sm:$0xf]
    %v1357 = vld [vmem:[%s1342 + $0x38] sm:$0xf]
    %v1358 = vld [vmem:[%s1342 + $0x3c] sm:$0xf]
    %v1359 = vld [vmem:[%s1342 + $0x40] sm:$0xf]
    %v1360 = vld [vmem:[%s1342 + $0x44] sm:$0xf]
    %v1361 = vld [vmem:[%s1342 + $0x48] sm:$0xf]
    %v1362 = vld [vmem:[%s1342 + $0x4c] sm:$0xf]
    %v1363 = vld [vmem:[%s1342 + $0x50] sm:$0xf]
    %v1364 = vld [vmem:[%s1342 + $0x54] sm:$0xf]
    %v1365 = vld [vmem:[%s1342 + $0x58] sm:$0xf]
    %v1366 = vld [vmem:[%s1342 + $0x5c] sm:$0xf]
    %v1367 = vld [vmem:[%s1342 + $0x60] sm:$0xf]
    %v1368 = vld [vmem:[%s1342 + $0x64] sm:$0xf]
    %v1369 = vld [vmem:[%s1342 + $0x68] sm:$0xf]
    %v1370 = vld [vmem:[%s1342 + $0x6c] sm:$0xf]
    %v1371 = vld [vmem:[%s1342 + $0x70] sm:$0xf]
    %v1372 = vld [vmem:[%s1342 + $0x74] sm:$0xf]
    %v1373 = vld [vmem:[%s1342 + $0x78] sm:$0xf]
    %v1374 = vld [vmem:[%s1342 + $0x7c] sm:$0xf]
    %v1375 = vld [vmem:[%s1342 + $0x80] sm:$0xf]
    %v1376 = vld [vmem:[%s1342 + $0x84] sm:$0xf]
    %v1377 = vld [vmem:[%s1342 + $0x88] sm:$0xf]
    %v1378 = vld [vmem:[%s1342 + $0x8c] sm:$0xf]
    %v1379 = vld [vmem:[%s1342 + $0x90] sm:$0xf]
    %v1380 = vld [vmem:[%s1342 + $0x94] sm:$0xf]
    %v1381 = vld [vmem:[%s1342 + $0x98] sm:$0xf]
    %v1382 = vld [vmem:[%s1342 + $0x9c] sm:$0xf]
    %v1383 = vld [vmem:[%s1342 + $0xa0] sm:$0xf]
    %v1384 = vld [vmem:[%s1342 + $0xa4] sm:$0xf]
    %v1385 = vld [vmem:[%s1342 + $0xa8] sm:$0xf]
    %v1386 = vld [vmem:[%s1342 + $0xac] sm:$0xf]
    %v1387 = vld [vmem:[%s1342 + $0xb0] sm:$0xf]
    %v1388 = vld [vmem:[%s1342 + $0xb4] sm:$0xf]
    %v1389 = vld [vmem:[%s1342 + $0xb8] sm:$0xf]
    %v1390 = vld [vmem:[%s1342 + $0xbc] sm:$0xf]
    %s1391 = scalar_lea.vmem %s2, 2
    %v1392 = vld [vmem:[%s1391] sm:$0x1]
    %v1394 = vlaneseq
    %v1395 = vshrl.u32 %v1394, 7
    %v1396 = vsub.s32 0, %v1395
    %v1397 = vrot.slane %v1392, %v1396
    %v1447 = vunpack.c.l.b16 %v1343
    %v1448 = vunpack.c.l.b16 %v1344
    %v1449 = vunpack.c.l.b16 %v1345
    %v1450 = vunpack.c.l.b16 %v1346
    %v1451 = vunpack.c.l.b16 %v1347
    %v1452 = vunpack.c.l.b16 %v1348
    %v1453 = vunpack.c.l.b16 %v1349
    %v1454 = vunpack.c.l.b16 %v1350
    %v1455 = vunpack.c.l.b16 %v1351
    %v1456 = vunpack.c.l.b16 %v1352
    %v1457 = vunpack.c.l.b16 %v1353
    %v1458 = vunpack.c.l.b16 %v1354
    %v1459 = vunpack.c.l.b16 %v1355
    %v1460 = vunpack.c.l.b16 %v1356
    %v1461 = vunpack.c.l.b16 %v1357
    %v1462 = vunpack.c.l.b16 %v1358
    %v1463 = vunpack.c.l.b16 %v1359
    %v1464 = vunpack.c.l.b16 %v1360
    %v1465 = vunpack.c.l.b16 %v1361
    %v1466 = vunpack.c.l.b16 %v1362
    %v1467 = vunpack.c.l.b16 %v1363
    %v1468 = vunpack.c.l.b16 %v1364
    %v1469 = vunpack.c.l.b16 %v1365
    %v1470 = vunpack.c.l.b16 %v1366
    %v1471 = vunpack.c.l.b16 %v1367
    %v1472 = vunpack.c.l.b16 %v1368
    %v1473 = vunpack.c.l.b16 %v1369
    %v1474 = vunpack.c.l.b16 %v1370
    %v1475 = vunpack.c.l.b16 %v1371
    %v1476 = vunpack.c.l.b16 %v1372
    %v1477 = vunpack.c.l.b16 %v1373
    %v1478 = vunpack.c.l.b16 %v1374
    %v1479 = vunpack.c.l.b16 %v1375
    %v1480 = vunpack.c.l.b16 %v1376
    %v1481 = vunpack.c.l.b16 %v1377
    %v1482 = vunpack.c.l.b16 %v1378
    %v1483 = vunpack.c.l.b16 %v1379
    %v1484 = vunpack.c.l.b16 %v1380
    %v1485 = vunpack.c.l.b16 %v1381
    %v1486 = vunpack.c.l.b16 %v1382
    %v1487 = vunpack.c.l.b16 %v1383
    %v1488 = vunpack.c.l.b16 %v1384
    %v1489 = vunpack.c.l.b16 %v1385
    %v1490 = vunpack.c.l.b16 %v1386
    %v1491 = vunpack.c.l.b16 %v1387
    %v1492 = vunpack.c.l.b16 %v1388
    %v1493 = vunpack.c.l.b16 %v1389
    %v1494 = vunpack.c.l.b16 %v1390
    %v1495 = vpack.c.b16 %v1448, %v1447
    %v1496 = vpack.c.b16 %v1450, %v1449
    %v1497 = vpack.c.b16 %v1452, %v1451
    %v1498 = vpack.c.b16 %v1454, %v1453
    %v1499 = vpack.c.b16 %v1456, %v1455
    %v1500 = vpack.c.b16 %v1458, %v1457
    %v1501 = vpack.c.b16 %v1460, %v1459
    %v1502 = vpack.c.b16 %v1462, %v1461
    %v1503 = vpack.c.b16 %v1464, %v1463
    %v1504 = vpack.c.b16 %v1466, %v1465
    %v1505 = vpack.c.b16 %v1468, %v1467
    %v1506 = vpack.c.b16 %v1470, %v1469
    %v1507 = vpack.c.b16 %v1472, %v1471
    %v1508 = vpack.c.b16 %v1474, %v1473
    %v1509 = vpack.c.b16 %v1476, %v1475
    %v1510 = vpack.c.b16 %v1478, %v1477
    %v1511 = vpack.c.b16 %v1480, %v1479
    %v1512 = vpack.c.b16 %v1482, %v1481
    %v1513 = vpack.c.b16 %v1484, %v1483
    %v1514 = vpack.c.b16 %v1486, %v1485
    %v1515 = vpack.c.b16 %v1488, %v1487
    %v1516 = vpack.c.b16 %v1490, %v1489
    %v1517 = vpack.c.b16 %v1492, %v1491
    %v1518 = vpack.c.b16 %v1494, %v1493
    %1543 = vmatprep.subr.bf16.mxu0 0
    %1544 = vmatpush1.bf16.msra.mxu0 %v1495
    %1545 = vmatprep.subr.bf16.mxu0 0
    %1546 = vmatpush1.bf16.msra.mxu0 %v1496
    %1547 = vmatprep.subr.bf16.mxu0 0
    %1548 = vmatpush1.bf16.msra.mxu0 %v1497
    %1549 = vmatprep.subr.bf16.mxu0 0
    %1550 = vmatpush1.bf16.msra.mxu0 %v1498
    %1551 = vmatprep.subr.bf16.mxu0 0
    %1552 = vmatpush1.bf16.msra.mxu0 %v1499
    %1553 = vmatprep.subr.bf16.mxu0 0
    %1554 = vmatpush1.bf16.msra.mxu0 %v1500
    %1555 = vmatprep.subr.bf16.mxu0 0
    %1556 = vmatpush1.bf16.msra.mxu0 %v1501
    %1557 = vmatprep.subr.bf16.mxu0 0
    %1558 = vmatpush1.bf16.msra.mxu0 %v1502
    %1559 = vmatprep.subr.bf16.mxu0 0
    %1560 = vmatpush1.bf16.msra.mxu0 %v1503
    %1561 = vmatprep.subr.bf16.mxu0 0
    %1562 = vmatpush1.bf16.msra.mxu0 %v1504
    %1563 = vmatprep.subr.bf16.mxu0 0
    %1564 = vmatpush1.bf16.msra.mxu0 %v1505
    %1565 = vmatprep.subr.bf16.mxu0 0
    %1566 = vmatpush1.bf16.msra.mxu0 %v1506
    %1567 = vmatprep.subr.bf16.mxu0 0
    %1568 = vmatpush1.bf16.msra.mxu0 %v1507
    %1569 = vmatprep.subr.bf16.mxu0 0
    %1570 = vmatpush1.bf16.msra.mxu0 %v1508
    %1571 = vmatprep.subr.bf16.mxu0 0
    %1572 = vmatpush1.bf16.msra.mxu0 %v1509
    %1573 = vmatprep.subr.bf16.mxu0 0
    %1574 = vmatpush1.bf16.msra.mxu0 %v1510
    %1575 = vmatprep.mubr.bf16.mxu0 %v1218
    %1576 = vmatmul.mubr.bf16.gmra.mrb[0].mxu0 %v1199
    %v1577 = vpop.f32.mrb[0].mxu0
    %v1578 = vadd.f32 %v1397, %v1577
    %v1579 = vpop.f32.mrb[0].mxu0
    %v1580 = vpop.f32.mrb[0].mxu0
    %v1581 = vadd.f32 %v1397, %v1580
    %v1582 = vpop.f32.mrb[0].mxu0
    %1583 = vmatprep.mubr.bf16.mxu0 %v1226
    %1584 = vmatmul.mubr.bf16.gmra.mrb[0].mxu0 %v1200
    %v1585 = vpop.f32.mrb[0].mxu0
    %v1586 = vadd.f32 %v1397, %v1585
    %v1587 = vpop.f32.mrb[0].mxu0
    %v1588 = vpop.f32.mrb[0].mxu0
    %v1589 = vadd.f32 %v1397, %v1588
    %v1590 = vpop.f32.mrb[0].mxu0
    %1591 = vmatprep.mubr.bf16.mxu0 %v1234
    %1592 = vmatmul.mubr.bf16.gmra.mrb[0].mxu0 %v1201
    %v1593 = vpop.f32.mrb[0].mxu0
    %v1594 = vadd.f32 %v1397, %v1593
    %v1595 = vpop.f32.mrb[0].mxu0
    %v1596 = vpop.f32.mrb[0].mxu0
    %v1597 = vadd.f32 %v1397, %v1596
    %v1598 = vpop.f32.mrb[0].mxu0
    %1599 = vmatprep.mubr.bf16.mxu0 %v1336
    %1600 = vmatmul.mubr.bf16.gmra.mrb[0].mxu0 %v1332
    %v1601 = vpop.f32.mrb[0].mxu0
    %v1602 = vadd.f32 %v1397, %v1601
    %v1603 = vpop.f32.mrb[0].mxu0
    %v1604 = vpop.f32.mrb[0].mxu0
    %v1605 = vadd.f32 %v1397, %v1604
    %v1606 = vpop.f32.mrb[0].mxu0
    %1607 = vmatprep.mubr.bf16.mxu0 %v1303
    %1608 = vmatmul.mubr.bf16.gmra.mrb[0].mxu0 %v1301
    %v1609 = vpop.f32.mrb[0].mxu0
    %v1610 = vadd.f32 %v1397, %v1609
    %v1611 = vpop.f32.mrb[0].mxu0
    %v1612 = vpop.f32.mrb[0].mxu0
    %v1613 = vadd.f32 %v1397, %v1612
    %v1614 = vpop.f32.mrb[0].mxu0
    %1615 = vmatprep.mubr.bf16.mxu0 %v1309
    %1616 = vmatmul.mubr.bf16.gmra.mrb[0].mxu0 %v1307
    %v1617 = vpop.f32.mrb[0].mxu0
    %v1618 = vadd.f32 %v1397, %v1617
    %v1619 = vpop.f32.mrb[0].mxu0
    %v1620 = vpop.f32.mrb[0].mxu0
    %v1621 = vadd.f32 %v1397, %v1620
    %v1622 = vpop.f32.mrb[0].mxu0
    %1623 = vmatprep.mubr.bf16.mxu0 %v1315
    %1624 = vmatmul.mubr.bf16.gmra.mrb[0].mxu0 %v1313
    %v1625 = vpop.f32.mrb[0].mxu0
    %v1626 = vadd.f32 %v1397, %v1625
    %v1627 = vpop.f32.mrb[0].mxu0
    %v1628 = vpop.f32.mrb[0].mxu0
    %v1629 = vadd.f32 %v1397, %v1628
    %v1630 = vpop.f32.mrb[0].mxu0
    %1631 = vmatprep.mubr.bf16.mxu0 %v1314
    %1632 = vmatmul.mubr.bf16.gmra.mrb[0].mxu0 %v1312
    %v1633 = vpop.f32.mrb[0].mxu0
    %v1634 = vadd.f32 %v1397, %v1633
    %v1635 = vpop.f32.mrb[0].mxu0
    %v1636 = vpop.f32.mrb[0].mxu0
    %v1637 = vpop.f32.mrb[0].mxu0
    %1638 = vdwg.mxu0
    %1639 = vmatprep.subr.bf16.mxu0 0
    %1640 = vmatpush1.bf16.msra.mxu0 %v1511
    %1641 = vmatprep.subr.bf16.mxu0 0
    %1642 = vmatpush1.bf16.msra.mxu0 %v1512
    %1643 = vmatprep.subr.bf16.mxu0 0
    %1644 = vmatpush1.bf16.msra.mxu0 %v1513
    %1645 = vmatprep.subr.bf16.mxu0 0
    %1646 = vmatpush1.bf16.msra.mxu0 %v1514
    %1647 = vmatprep.subr.bf16.mxu0 0
    %1648 = vmatpush1.bf16.msra.mxu0 %v1515
    %1649 = vmatprep.subr.bf16.mxu0 0
    %1650 = vmatpush1.bf16.msra.mxu0 %v1516
    %1651 = vmatprep.subr.bf16.mxu0 0
    %1652 = vmatpush1.bf16.msra.mxu0 %v1517
    %1653 = vmatprep.subr.bf16.mxu0 0
    %1654 = vmatpush1.bf16.msra.mxu0 %v1518
    %1655 = vmatprep.subr.bf16.mxu0 0
    %1656 = vmatpush1.bf16.msra.mxu0 0
    %1657 = vmatprep.subr.bf16.mxu0 0
    %1658 = vmatpush1.bf16.msra.mxu0 0
    %1659 = vmatprep.subr.bf16.mxu0 0
    %1660 = vmatpush1.bf16.msra.mxu0 0
    %1661 = vmatprep.subr.bf16.mxu0 0
    %1662 = vmatpush1.bf16.msra.mxu0 0
    %1663 = vmatprep.subr.bf16.mxu0 0
    %1664 = vmatpush1.bf16.msra.mxu0 0
    %1665 = vmatprep.subr.bf16.mxu0 0
    %1666 = vmatpush1.bf16.msra.mxu0 0
    %1667 = vmatprep.subr.bf16.mxu0 0
    %1668 = vmatpush1.bf16.msra.mxu0 0
    %1669 = vmatprep.subr.bf16.mxu0 0
    %1670 = vmatpush1.bf16.msra.mxu0 0
    %1671 = vmatprep.mubr.bf16.mxu0 0
    %1672 = vmatmul.mubr.bf16.gmra.mrb[0].mxu0 %v1247
    %v1673 = vpop.f32.mrb[0].mxu0
    %v1674 = vadd.f32 %v1578, %v1673
    %v1675 = vpop.f32.mrb[0].mxu0
    %v1676 = vpop.f32.mrb[0].mxu0
    %v1677 = vadd.f32 %v1581, %v1676
    %v1678 = vpop.f32.mrb[0].mxu0
    %1679 = vmatprep.mubr.bf16.mxu0 0
    %1680 = vmatmul.mubr.bf16.gmra.mrb[0].mxu0 %v1249
    %v1681 = vpop.f32.mrb[0].mxu0
    %v1682 = vadd.f32 %v1586, %v1681
    %v1683 = vpop.f32.mrb[0].mxu0
    %v1684 = vpop.f32.mrb[0].mxu0
    %v1685 = vadd.f32 %v1589, %v1684
    %v1686 = vpop.f32.mrb[0].mxu0
    %1687 = vmatprep.mubr.bf16.mxu0 0
    %1688 = vmatmul.mubr.bf16.gmra.mrb[0].mxu0 %v1251
    %v1689 = vpop.f32.mrb[0].mxu0
    %v1690 = vadd.f32 %v1594, %v1689
    %v1691 = vpop.f32.mrb[0].mxu0
    %v1692 = vpop.f32.mrb[0].mxu0
    %v1693 = vadd.f32 %v1597, %v1692
    %v1694 = vpop.f32.mrb[0].mxu0
    %1695 = vmatprep.mubr.bf16.mxu0 0
    %1696 = vmatmul.mubr.bf16.gmra.mrb[0].mxu0 %v1340
    %v1697 = vpop.f32.mrb[0].mxu0
    %v1698 = vadd.f32 %v1602, %v1697
    %v1699 = vpop.f32.mrb[0].mxu0
    %v1700 = vpop.f32.mrb[0].mxu0
    %v1701 = vadd.f32 %v1605, %v1700
    %v1702 = vpop.f32.mrb[0].mxu0
    %1703 = vmatprep.mubr.bf16.mxu0 0
    %1704 = vmatmul.mubr.bf16.gmra.mrb[0].mxu0 %v1305
    %v1705 = vpop.f32.mrb[0].mxu0
    %v1706 = vadd.f32 %v1610, %v1705
    %v1707 = vpop.f32.mrb[0].mxu0
    %v1708 = vpop.f32.mrb[0].mxu0
    %v1709 = vadd.f32 %v1613, %v1708
    %v1710 = vpop.f32.mrb[0].mxu0
    %1711 = vmatprep.mubr.bf16.mxu0 0
    %1712 = vmatmul.mubr.bf16.gmra.mrb[0].mxu0 %v1311
    %v1713 = vpop.f32.mrb[0].mxu0
    %v1714 = vadd.f32 %v1618, %v1713
    %v1715 = vpop.f32.mrb[0].mxu0
    %v1716 = vpop.f32.mrb[0].mxu0
    %v1717 = vadd.f32 %v1621, %v1716
    %v1718 = vpop.f32.mrb[0].mxu0
    %1719 = vmatprep.mubr.bf16.mxu0 0
    %1720 = vmatmul.mubr.bf16.gmra.mrb[0].mxu0 %v1317
    %v1721 = vpop.f32.mrb[0].mxu0
    %v1722 = vadd.f32 %v1626, %v1721
    %v1723 = vpop.f32.mrb[0].mxu0
    %v1724 = vpop.f32.mrb[0].mxu0
    %v1725 = vadd.f32 %v1629, %v1724
    %v1726 = vpop.f32.mrb[0].mxu0
    %1727 = vmatprep.mubr.bf16.mxu0 0
    %1728 = vmatmul.mubr.bf16.gmra.mrb[0].mxu0 %v1316
    %v1729 = vpop.f32.mrb[0].mxu0
    %v1730 = vadd.f32 %v1634, %v1729
    %v1731 = vpop.f32.mrb[0].mxu0
    %v1732 = vpop.f32.mrb[0].mxu0
    %v1733 = vpop.f32.mrb[0].mxu0
    %1734 = vdwg.mxu0
    %v1735 = vpack.c.bf16 %v1677, %v1674
    %v1736 = vpack.c.bf16 %v1685, %v1682
    %v1737 = vpack.c.bf16 %v1693, %v1690
    %v1738 = vpack.c.bf16 %v1701, %v1698
    %v1739 = vpack.c.bf16 %v1706, %v1701
    %v1740 = vpack.c.bf16 %v1714, %v1709
    %v1741 = vpack.c.bf16 %v1722, %v1717
    %v1742 = vpack.c.bf16 %v1730, %v1725
    %1743 = vxpose.xlu0.b32.start [1/16] %v1674, 128
    %1744 = vxpose.xlu0.b32.cont [2/16] %v1677, 128
    %1745 = vxpose.xlu0.b32.cont [3/16] %v1682, 128
    %1746 = vxpose.xlu0.b32.cont [4/16] %v1685, 128
    %1747 = vxpose.xlu0.b32.cont [5/16] %v1690, 128
    %1748 = vxpose.xlu0.b32.cont [6/16] %v1693, 128
    %1749 = vxpose.xlu0.b32.cont [7/16] %v1698, 128
    %1750 = vxpose.xlu0.b32.cont [8/16] %v1701, 128
    %1751 = vxpose.xlu0.b32.cont [9/16] 0.0, 128
    %1752 = vxpose.xlu0.b32.cont [10/16] 0.0, 128
    %1753 = vxpose.xlu0.b32.cont [11/16] 0.0, 128
    %1754 = vxpose.xlu0.b32.cont [12/16] 0.0, 128
    %1755 = vxpose.xlu0.b32.cont [13/16] 0.0, 128
    %1756 = vxpose.xlu0.b32.cont [14/16] 0.0, 128
    %1757 = vxpose.xlu0.b32.cont [15/16] 0.0, 128
    %1758 = vxpose.xlu0.b32.end [16/16] 0.0, 128
    %v1759 = vpop.trf.xlu0
    %v1760 = vpop.trf.xlu0
    %v1761 = vpop.trf.xlu0
    %v1762 = vpop.trf.xlu0
    %v1763 = vpop.trf.xlu0
    %v1764 = vpop.trf.xlu0
    %v1765 = vpop.trf.xlu0
    %v1766 = vpop.trf.xlu0
    %v1767 = vpop.trf.xlu0
    %v1768 = vpop.trf.xlu0
    %v1769 = vpop.trf.xlu0
    %v1770 = vpop.trf.xlu0
    %v1771 = vpop.trf.xlu0
    %v1772 = vpop.trf.xlu0
    %v1773 = vpop.trf.xlu0
    %v1774 = vpop.trf.xlu0
    %vm1775 = vcmask 474112
    %1776 = vst.msk [vmem:[#allocation7] sm:$0xff] %vm1775, %v1759
    %1777 = vst.msk [vmem:[#allocation7 + $0x8] sm:$0xff] %vm1775, %v1760
    %1778 = vst.msk [vmem:[#allocation7 + $0x10] sm:$0xff] %vm1775, %v1761
    %1779 = vst.msk [vmem:[#allocation7 + $0x18] sm:$0xff] %vm1775, %v1762
    %v1788 = vrot.slane %v1701, 2
    %v1789 = vrot.slane %v1706, 2
    %v1790 = vsel %vm779, %v1788, %v1789
    %v1791 = vrot.slane %v1709, 2
    %v1792 = vsel %vm779, %v1789, %v1791
    %v1793 = vrot.slane %v1714, 2
    %v1794 = vsel %vm779, %v1791, %v1793
    %v1795 = vrot.slane %v1717, 2
    %v1796 = vsel %vm779, %v1793, %v1795
    %v1797 = vrot.slane %v1722, 2
    %v1798 = vsel %vm779, %v1795, %v1797
    %v1799 = vrot.slane %v1725, 2
    %v1800 = vsel %vm779, %v1797, %v1799
    %v1801 = vrot.slane %v1730, 2
    %v1802 = vsel %vm779, %v1799, %v1801
    %1811 = vxpose.xlu0.b32.start [1/16] %v1790, 128
    %1812 = vxpose.xlu0.b32.cont [2/16] %v1792, 128
    %1813 = vxpose.xlu0.b32.cont [3/16] %v1794, 128
    %1814 = vxpose.xlu0.b32.cont [4/16] %v1796, 128
    %1815 = vxpose.xlu0.b32.cont [5/16] %v1798, 128
    %1816 = vxpose.xlu0.b32.cont [6/16] %v1800, 128
    %1817 = vxpose.xlu0.b32.cont [7/16] %v1802, 128
    %1818 = vxpose.xlu0.b32.cont [8/16] %v1801, 128
    %1819 = vxpose.xlu0.b32.cont [9/16] 0.0, 128
    %1820 = vxpose.xlu0.b32.cont [10/16] 0.0, 128
    %1821 = vxpose.xlu0.b32.cont [11/16] 0.0, 128
    %1822 = vxpose.xlu0.b32.cont [12/16] 0.0, 128
    %1823 = vxpose.xlu0.b32.cont [13/16] 0.0, 128
    %1824 = vxpose.xlu0.b32.cont [14/16] 0.0, 128
    %1825 = vxpose.xlu0.b32.cont [15/16] 0.0, 128
    %1826 = vxpose.xlu0.b32.end [16/16] 0.0, 128
    %v1827 = vpop.trf.xlu0
    %v1828 = vpop.trf.xlu0
    %v1829 = vpop.trf.xlu0
    %v1830 = vpop.trf.xlu0
    %v1831 = vpop.trf.xlu0
    %v1832 = vpop.trf.xlu0
    %v1833 = vpop.trf.xlu0
    %v1834 = vpop.trf.xlu0
    %v1835 = vpop.trf.xlu0
    %v1836 = vpop.trf.xlu0
    %v1837 = vpop.trf.xlu0
    %v1838 = vpop.trf.xlu0
    %v1839 = vpop.trf.xlu0
    %v1840 = vpop.trf.xlu0
    %v1841 = vpop.trf.xlu0
    %v1842 = vpop.trf.xlu0
    %s1843 = scalar_lea.vmem [#allocation7], 32
    %1844 = vst.msk [vmem:[%s1843] sm:$0xff] %vm1775, %v1827
    %1845 = vst.msk [vmem:[%s1843 + $0x8] sm:$0xff] %vm1775, %v1828
    %1846 = vst.msk [vmem:[%s1843 + $0x10] sm:$0xff] %vm1775, %v1829
    %1847 = vst.msk [vmem:[%s1843 + $0x18] sm:$0xff] %vm1775, %v1830
    %vm1848 = vsmask.f32 3328
    %v1850 = vshrl.u32 %v1735, 16
    %v1852 = vrot.slane %v1850, 4
    %v1853 = vshll.u32 %v1735, 16
    %v1855 = vrot.slane %v1853, 5
    %v1856 = vor.u32 %v1852, %v1855
    %v1858 = vshrl.u32 %v1736, 16
    %v1860 = vrot.slane %v1858, 4
    %v1861 = vshll.u32 %v1736, 16
    %v1863 = vrot.slane %v1861, 5
    %v1864 = vor.u32 %v1860, %v1863
    %v1865 = vsel %vm1848, %v1856, %v1864
    %v1867 = vshrl.u32 %v1737, 16
    %v1869 = vrot.slane %v1867, 4
    %v1870 = vshll.u32 %v1737, 16
    %v1872 = vrot.slane %v1870, 5
    %v1873 = vor.u32 %v1869, %v1872
    %v1874 = vsel %vm1848, %v1864, %v1873
    %v1876 = vshrl.u32 %v1738, 16
    %v1878 = vrot.slane %v1876, 4
    %v1879 = vshll.u32 %v1738, 16
    %v1881 = vrot.slane %v1879, 5
    %v1882 = vor.u32 %v1878, %v1881
    %v1883 = vsel %vm1848, %v1873, %v1882
    %vm1888 = vcmask 1043456
    %vm1889 = vmand %vm1888, %vm1848
    %v1890 = vsel %vm1889, 0, %v1856
    %vm1891 = vsmask.f32 2304
    %v1893 = vshrl.u32 %v1739, 16
    %v1895 = vrot.slane %v1893, 5
    %v1896 = vshll.u32 %v1739, 16
    %v1898 = vrot.slane %v1896, 6
    %v1899 = vor.u32 %v1895, %v1898
    %v1901 = vshrl.u32 %v1740, 16
    %v1903 = vrot.slane %v1901, 5
    %v1904 = vshll.u32 %v1740, 16
    %v1906 = vrot.slane %v1904, 6
    %v1907 = vor.u32 %v1903, %v1906
    %v1908 = vsel %vm1891, %v1899, %v1907
    %v1910 = vshrl.u32 %v1741, 16
    %v1912 = vrot.slane %v1910, 5
    %v1913 = vshll.u32 %v1741, 16
    %v1915 = vrot.slane %v1913, 6
    %v1916 = vor.u32 %v1912, %v1915
    %v1917 = vsel %vm1891, %v1907, %v1916
    %v1919 = vshrl.u32 %v1742, 16
    %v1921 = vrot.slane %v1919, 5
    %v1922 = vshll.u32 %v1742, 16
    %v1924 = vrot.slane %v1922, 6
    %v1925 = vor.u32 %v1921, %v1924
    %v1926 = vsel %vm1891, %v1916, %v1925
    %v1928 = vsel %vm1889, 0, %v1899
    %v1930 = vshrl.u32 %v1890, 16
    %v1932 = vshll.u32 %v1890, 16
    %v1934 = vrot.slane %v1932, 1
    %v1935 = vor.u32 %v1930, %v1934
    %v1937 = vshll.u32 %v1865, 16
    %v1939 = vrot.slane %v1937, 1
    %v1940 = vsel %vm98, %v1935, %v1939
    %v1941 = vshrl.u32 %v1865, 16
    %v1943 = vor.u32 %v1941, %v1939
    %v1945 = vshll.u32 %v1874, 16
    %v1947 = vrot.slane %v1945, 1
    %v1948 = vsel %vm98, %v1943, %v1947
    %v1949 = vshrl.u32 %v1874, 16
    %v1951 = vor.u32 %v1949, %v1947
    %v1953 = vshll.u32 %v1883, 16
    %v1955 = vrot.slane %v1953, 1
    %v1956 = vsel %vm98, %v1951, %v1955
    %v1957 = vshrl.u32 %v1883, 16
    %v1959 = vor.u32 %v1957, %v1955
    %v1965 = vrot.slane %v1890, 1
    %v1966 = vrot.slane %v1865, 1
    %v1967 = vsel %vm133, %v1965, %v1966
    %v1968 = vrot.slane %v1874, 1
    %v1969 = vsel %vm133, %v1966, %v1968
    %v1970 = vrot.slane %v1883, 1
    %v1971 = vsel %vm133, %v1968, %v1970
    %v1972 = vrot.slane %v1878, 1
    %v1973 = vsel %vm133, %v1970, %v1972
    %v1979 = vshrl.u32 %v1928, 16
    %v1981 = vshll.u32 %v1928, 16
    %v1983 = vrot.slane %v1981, 1
    %v1984 = vor.u32 %v1979, %v1983
    %v1986 = vshll.u32 %v1908, 16
    %v1988 = vrot.slane %v1986, 1
    %v1989 = vsel %vm98, %v1984, %v1988
    %v1990 = vshrl.u32 %v1908, 16
    %v1992 = vor.u32 %v1990, %v1988
    %v1994 = vshll.u32 %v1917, 16
    %v1996 = vrot.slane %v1994, 1
    %v1997 = vsel %vm98, %v1992, %v1996
    %v1998 = vshrl.u32 %v1917, 16
    %v2000 = vor.u32 %v1998, %v1996
    %v2002 = vshll.u32 %v1926, 16
    %v2004 = vrot.slane %v2002, 1
    %v2005 = vsel %vm98, %v2000, %v2004
    %v2006 = vshrl.u32 %v1926, 16
    %v2008 = vor.u32 %v2006, %v2004
    %v2010 = vrot.slane %v1928, 1
    %v2011 = vrot.slane %v1908, 1
    %v2012 = vsel %vm133, %v2010, %v2011
    %v2013 = vrot.slane %v1917, 1
    %v2014 = vsel %vm133, %v2011, %v2013
    %v2015 = vrot.slane %v1926, 1
    %v2016 = vsel %vm133, %v2013, %v2015
    %v2017 = vrot.slane %v1921, 1
    %v2018 = vsel %vm133, %v2015, %v2017
    %v2020 = vshll.u32 %v1989, 16
    %v2022 = vrot.slane %v2020, 1
    %v2024 = vshll.u32 %v2012, 16
    %v2026 = vrot.slane %v2024, 1
    %v2027 = vshrl.u32 %v1989, 16
    %v2029 = vor.u32 %v2027, %v2022
    %v2031 = vshll.u32 %v1997, 16
    %v2033 = vrot.slane %v2031, 1
    %v2034 = vsel %vm98, %v2029, %v2033
    %v2035 = vshrl.u32 %v2012, 16
    %v2037 = vor.u32 %v2035, %v2026
    %v2039 = vshll.u32 %v2014, 16
    %v2041 = vrot.slane %v2039, 1
    %v2042 = vsel %vm98, %v2037, %v2041
    %v2043 = vshrl.u32 %v1997, 16
    %v2045 = vor.u32 %v2043, %v2033
    %v2047 = vshll.u32 %v2005, 16
    %v2049 = vrot.slane %v2047, 1
    %v2050 = vsel %vm98, %v2045, %v2049
    %v2051 = vshrl.u32 %v2014, 16
    %v2053 = vor.u32 %v2051, %v2041
    %v2055 = vshll.u32 %v2016, 16
    %v2057 = vrot.slane %v2055, 1
    %v2058 = vsel %vm98, %v2053, %v2057
    %v2059 = vshrl.u32 %v2005, 16
    %v2061 = vor.u32 %v2059, %v2049
    %v2063 = vshll.u32 %v2008, 16
    %v2065 = vrot.slane %v2063, 1
    %v2066 = vsel %vm98, %v2061, %v2065
    %v2067 = vshrl.u32 %v2016, 16
    %v2069 = vor.u32 %v2067, %v2057
    %v2071 = vshll.u32 %v2018, 16
    %v2073 = vrot.slane %v2071, 1
    %v2074 = vsel %vm98, %v2069, %v2073
    %v2075 = vshrl.u32 %v2008, 16
    %v2077 = vor.u32 %v2075, %v2065
    %v2078 = vshrl.u32 %v2018, 16
    %v2080 = vor.u32 %v2078, %v2073
    %vm2096 = vcmask 1047552
    %vm2097 = vmand %vm2096, %vm98
    %v2098 = vsel %vm2097, %v1883, %v1983
    %v2099 = vsel %vm2097, %v1959, %v2022
    %v2100 = vsel %vm2097, %v1973, %v2026
    %v2101 = vld [vmem:[#allocation5] sm:$0xf]
    %v2102 = vld [vmem:[#allocation5 + $0x4] sm:$0xf]
    %v2103 = vld [vmem:[#allocation5 + $0x8] sm:$0xf]
    %v2104 = vld [vmem:[#allocation5 + $0xc] sm:$0xf]
    %v2105 = vld [vmem:[#allocation5 + $0x10] sm:$0xf]
    %v2106 = vld [vmem:[#allocation5 + $0x14] sm:$0xf]
    %v2107 = vld [vmem:[#allocation5 + $0x18] sm:$0xf]
    %v2108 = vld [vmem:[#allocation5 + $0x1c] sm:$0xf]
    %v2109 = vld [vmem:[#allocation5 + $0x20] sm:$0xf]
    %v2110 = vld [vmem:[#allocation5 + $0x24] sm:$0xf]
    %v2111 = vld [vmem:[#allocation5 + $0x28] sm:$0xf]
    %v2112 = vld [vmem:[#allocation5 + $0x2c] sm:$0xf]
    %v2113 = vld [vmem:[#allocation5 + $0x30] sm:$0xf]
    %v2114 = vld [vmem:[#allocation5 + $0x34] sm:$0xf]
    %v2115 = vld [vmem:[#allocation5 + $0x38] sm:$0xf]
    %v2116 = vld [vmem:[#allocation5 + $0x3c] sm:$0xf]
    %v2117 = vld [vmem:[#allocation5 + $0x40] sm:$0xf]
    %v2118 = vld [vmem:[#allocation5 + $0x44] sm:$0xf]
    %v2119 = vld [vmem:[#allocation5 + $0x48] sm:$0xf]
    %v2120 = vld [vmem:[#allocation5 + $0x4c] sm:$0xf]
    %v2121 = vld [vmem:[#allocation5 + $0x50] sm:$0xf]
    %v2122 = vld [vmem:[#allocation5 + $0x54] sm:$0xf]
    %v2123 = vld [vmem:[#allocation5 + $0x58] sm:$0xf]
    %v2124 = vld [vmem:[#allocation5 + $0x5c] sm:$0xf]
    %v2125 = vld [vmem:[#allocation5 + $0x60] sm:$0xf]
    %v2126 = vld [vmem:[#allocation5 + $0x64] sm:$0xf]
    %v2127 = vld [vmem:[#allocation5 + $0x68] sm:$0xf]
    %v2128 = vld [vmem:[#allocation5 + $0x6c] sm:$0xf]
    %v2129 = vld [vmem:[#allocation5 + $0x70] sm:$0xf]
    %v2130 = vld [vmem:[#allocation5 + $0x74] sm:$0xf]
    %v2131 = vld [vmem:[#allocation5 + $0x78] sm:$0xf]
    %v2132 = vld [vmem:[#allocation5 + $0x7c] sm:$0xf]
    %v2133 = vld [vmem:[#allocation5 + $0x80] sm:$0xf]
    %v2134 = vld [vmem:[#allocation5 + $0x84] sm:$0xf]
    %v2135 = vld [vmem:[#allocation5 + $0x88] sm:$0xf]
    %v2136 = vld [vmem:[#allocation5 + $0x8c] sm:$0xf]
    %v2137 = vld [vmem:[#allocation5 + $0x90] sm:$0xf]
    %v2138 = vld [vmem:[#allocation5 + $0x94] sm:$0xf]
    %v2139 = vld [vmem:[#allocation5 + $0x98] sm:$0xf]
    %v2140 = vld [vmem:[#allocation5 + $0x9c] sm:$0xf]
    %v2141 = vld [vmem:[#allocation5 + $0xa0] sm:$0xf]
    %v2142 = vld [vmem:[#allocation5 + $0xa4] sm:$0xf]
    %v2143 = vld [vmem:[#allocation5 + $0xa8] sm:$0xf]
    %v2144 = vld [vmem:[#allocation5 + $0xac] sm:$0xf]
    %v2145 = vld [vmem:[#allocation5 + $0xb0] sm:$0xf]
    %v2146 = vld [vmem:[#allocation5 + $0xb4] sm:$0xf]
    %v2147 = vld [vmem:[#allocation5 + $0xb8] sm:$0xf]
    %v2148 = vld [vmem:[#allocation5 + $0xbc] sm:$0xf]
    %v2149 = vld [vmem:[%s4] sm:$0x1]
    %v2151 = vlaneseq
    %v2152 = vshrl.u32 %v2151, 7
    %v2153 = vsub.s32 0, %v2152
    %v2154 = vrot.slane %v2149, %v2153
    %v2204 = vunpack.c.l.b16 %v2101
    %v2205 = vunpack.c.l.b16 %v2102
    %v2206 = vunpack.c.l.b16 %v2103
    %v2207 = vunpack.c.l.b16 %v2104
    %v2208 = vunpack.c.l.b16 %v2105
    %v2209 = vunpack.c.l.b16 %v2106
    %v2210 = vunpack.c.l.b16 %v2107
    %v2211 = vunpack.c.l.b16 %v2108
    %v2212 = vunpack.c.l.b16 %v2109
    %v2213 = vunpack.c.l.b16 %v2110
    %v2214 = vunpack.c.l.b16 %v2111
    %v2215 = vunpack.c.l.b16 %v2112
    %v2216 = vunpack.c.l.b16 %v2113
    %v2217 = vunpack.c.l.b16 %v2114
    %v2218 = vunpack.c.l.b16 %v2115
    %v2219 = vunpack.c.l.b16 %v2116
    %v2220 = vunpack.c.l.b16 %v2117
    %v2221 = vunpack.c.l.b16 %v2118
    %v2222 = vunpack.c.l.b16 %v2119
    %v2223 = vunpack.c.l.b16 %v2120
    %v2224 = vunpack.c.l.b16 %v2121
    %v2225 = vunpack.c.l.b16 %v2122
    %v2226 = vunpack.c.l.b16 %v2123
    %v2227 = vunpack.c.l.b16 %v2124
    %v2228 = vunpack.c.l.b16 %v2125
    %v2229 = vunpack.c.l.b16 %v2126
    %v2230 = vunpack.c.l.b16 %v2127
    %v2231 = vunpack.c.l.b16 %v2128
    %v2232 = vunpack.c.l.b16 %v2129
    %v2233 = vunpack.c.l.b16 %v2130
    %v2234 = vunpack.c.l.b16 %v2131
    %v2235 = vunpack.c.l.b16 %v2132
    %v2236 = vunpack.c.l.b16 %v2133
    %v2237 = vunpack.c.l.b16 %v2134
    %v2238 = vunpack.c.l.b16 %v2135
    %v2239 = vunpack.c.l.b16 %v2136
    %v2240 = vunpack.c.l.b16 %v2137
    %v2241 = vunpack.c.l.b16 %v2138
    %v2242 = vunpack.c.l.b16 %v2139
    %v2243 = vunpack.c.l.b16 %v2140
    %v2244 = vunpack.c.l.b16 %v2141
    %v2245 = vunpack.c.l.b16 %v2142
    %v2246 = vunpack.c.l.b16 %v2143
    %v2247 = vunpack.c.l.b16 %v2144
    %v2248 = vunpack.c.l.b16 %v2145
    %v2249 = vunpack.c.l.b16 %v2146
    %v2250 = vunpack.c.l.b16 %v2147
    %v2251 = vunpack.c.l.b16 %v2148
    %v2252 = vpack.c.b16 %v2205, %v2204
    %v2253 = vpack.c.b16 %v2207, %v2206
    %v2254 = vpack.c.b16 %v2209, %v2208
    %v2255 = vpack.c.b16 %v2211, %v2210
    %v2256 = vpack.c.b16 %v2213, %v2212
    %v2257 = vpack.c.b16 %v2215, %v2214
    %v2258 = vpack.c.b16 %v2217, %v2216
    %v2259 = vpack.c.b16 %v2219, %v2218
    %v2260 = vpack.c.b16 %v2221, %v2220
    %v2261 = vpack.c.b16 %v2223, %v2222
    %v2262 = vpack.c.b16 %v2225, %v2224
    %v2263 = vpack.c.b16 %v2227, %v2226
    %v2264 = vpack.c.b16 %v2229, %v2228
    %v2265 = vpack.c.b16 %v2231, %v2230
    %v2266 = vpack.c.b16 %v2233, %v2232
    %v2267 = vpack.c.b16 %v2235, %v2234
    %v2268 = vpack.c.b16 %v2237, %v2236
    %v2269 = vpack.c.b16 %v2239, %v2238
    %v2270 = vpack.c.b16 %v2241, %v2240
    %v2271 = vpack.c.b16 %v2243, %v2242
    %v2272 = vpack.c.b16 %v2245, %v2244
    %v2273 = vpack.c.b16 %v2247, %v2246
    %v2274 = vpack.c.b16 %v2249, %v2248
    %v2275 = vpack.c.b16 %v2251, %v2250
    %2300 = vmatprep.subr.bf16.mxu0 0
    %2301 = vmatpush1.bf16.msra.mxu0 %v2252
    %2302 = vmatprep.subr.bf16.mxu0 0
    %2303 = vmatpush1.bf16.msra.mxu0 %v2253
    %2304 = vmatprep.subr.bf16.mxu0 0
    %2305 = vmatpush1.bf16.msra.mxu0 %v2254
    %2306 = vmatprep.subr.bf16.mxu0 0
    %2307 = vmatpush1.bf16.msra.mxu0 %v2255
    %2308 = vmatprep.subr.bf16.mxu0 0
    %2309 = vmatpush1.bf16.msra.mxu0 %v2256
    %2310 = vmatprep.subr.bf16.mxu0 0
    %2311 = vmatpush1.bf16.msra.mxu0 %v2257
    %2312 = vmatprep.subr.bf16.mxu0 0
    %2313 = vmatpush1.bf16.msra.mxu0 %v2258
    %2314 = vmatprep.subr.bf16.mxu0 0
    %2315 = vmatpush1.bf16.msra.mxu0 %v2259
    %2316 = vmatprep.subr.bf16.mxu0 0
    %2317 = vmatpush1.bf16.msra.mxu0 %v2260
    %2318 = vmatprep.subr.bf16.mxu0 0
    %2319 = vmatpush1.bf16.msra.mxu0 %v2261
    %2320 = vmatprep.subr.bf16.mxu0 0
    %2321 = vmatpush1.bf16.msra.mxu0 %v2262
    %2322 = vmatprep.subr.bf16.mxu0 0
    %2323 = vmatpush1.bf16.msra.mxu0 %v2263
    %2324 = vmatprep.subr.bf16.mxu0 0
    %2325 = vmatpush1.bf16.msra.mxu0 %v2264
    %2326 = vmatprep.subr.bf16.mxu0 0
    %2327 = vmatpush1.bf16.msra.mxu0 %v2265
    %2328 = vmatprep.subr.bf16.mxu0 0
    %2329 = vmatpush1.bf16.msra.mxu0 %v2266
    %2330 = vmatprep.subr.bf16.mxu0 0
    %2331 = vmatpush1.bf16.msra.mxu0 %v2267
    %2332 = vmatprep.mubr.bf16.mxu0 %v1940
    %2333 = vmatmul.mubr.bf16.gmra.mrb[0].mxu0 %v1890
    %v2334 = vpop.f32.mrb[0].mxu0
    %v2335 = vadd.f32 %v2154, %v2334
    %v2336 = vpop.f32.mrb[0].mxu0
    %v2337 = vpop.f32.mrb[0].mxu0
    %v2338 = vadd.f32 %v2154, %v2337
    %v2339 = vpop.f32.mrb[0].mxu0
    %2340 = vmatprep.mubr.bf16.mxu0 %v1948
    %2341 = vmatmul.mubr.bf16.gmra.mrb[0].mxu0 %v1865
    %v2342 = vpop.f32.mrb[0].mxu0
    %v2343 = vadd.f32 %v2154, %v2342
    %v2344 = vpop.f32.mrb[0].mxu0
    %v2345 = vpop.f32.mrb[0].mxu0
    %v2346 = vadd.f32 %v2154, %v2345
    %v2347 = vpop.f32.mrb[0].mxu0
    %2348 = vmatprep.mubr.bf16.mxu0 %v1956
    %2349 = vmatmul.mubr.bf16.gmra.mrb[0].mxu0 %v1874
    %v2350 = vpop.f32.mrb[0].mxu0
    %v2351 = vadd.f32 %v2154, %v2350
    %v2352 = vpop.f32.mrb[0].mxu0
    %v2353 = vpop.f32.mrb[0].mxu0
    %v2354 = vadd.f32 %v2154, %v2353
    %v2355 = vpop.f32.mrb[0].mxu0
    %2356 = vmatprep.mubr.bf16.mxu0 %v2099
    %2357 = vmatmul.mubr.bf16.gmra.mrb[0].mxu0 %v2098
    %v2358 = vpop.f32.mrb[0].mxu0
    %v2359 = vadd.f32 %v2154, %v2358
    %v2360 = vpop.f32.mrb[0].mxu0
    %v2361 = vpop.f32.mrb[0].mxu0
    %v2362 = vadd.f32 %v2154, %v2361
    %v2363 = vpop.f32.mrb[0].mxu0
    %2364 = vmatprep.mubr.bf16.mxu0 %v2034
    %2365 = vmatmul.mubr.bf16.gmra.mrb[0].mxu0 %v1989
    %v2366 = vpop.f32.mrb[0].mxu0
    %v2367 = vadd.f32 %v2154, %v2366
    %v2368 = vpop.f32.mrb[0].mxu0
    %v2369 = vpop.f32.mrb[0].mxu0
    %v2370 = vadd.f32 %v2154, %v2369
    %v2371 = vpop.f32.mrb[0].mxu0
    %2372 = vmatprep.mubr.bf16.mxu0 %v2050
    %2373 = vmatmul.mubr.bf16.gmra.mrb[0].mxu0 %v1997
    %v2374 = vpop.f32.mrb[0].mxu0
    %v2375 = vadd.f32 %v2154, %v2374
    %v2376 = vpop.f32.mrb[0].mxu0
    %v2377 = vpop.f32.mrb[0].mxu0
    %v2378 = vadd.f32 %v2154, %v2377
    %v2379 = vpop.f32.mrb[0].mxu0
    %2380 = vmatprep.mubr.bf16.mxu0 %v2066
    %2381 = vmatmul.mubr.bf16.gmra.mrb[0].mxu0 %v2005
    %v2382 = vpop.f32.mrb[0].mxu0
    %v2383 = vadd.f32 %v2154, %v2382
    %v2384 = vpop.f32.mrb[0].mxu0
    %v2385 = vpop.f32.mrb[0].mxu0
    %v2386 = vadd.f32 %v2154, %v2385
    %v2387 = vpop.f32.mrb[0].mxu0
    %2388 = vmatprep.mubr.bf16.mxu0 %v2077
    %2389 = vmatmul.mubr.bf16.gmra.mrb[0].mxu0 %v2008
    %v2390 = vpop.f32.mrb[0].mxu0
    %v2391 = vadd.f32 %v2154, %v2390
    %v2392 = vpop.f32.mrb[0].mxu0
    %v2393 = vpop.f32.mrb[0].mxu0
    %v2394 = vadd.f32 %v2154, %v2393
    %v2395 = vpop.f32.mrb[0].mxu0
    %2396 = vdwg.mxu0
    %2397 = vmatprep.subr.bf16.mxu0 0
    %2398 = vmatpush1.bf16.msra.mxu0 %v2268
    %2399 = vmatprep.subr.bf16.mxu0 0
    %2400 = vmatpush1.bf16.msra.mxu0 %v2269
    %2401 = vmatprep.subr.bf16.mxu0 0
    %2402 = vmatpush1.bf16.msra.mxu0 %v2270
    %2403 = vmatprep.subr.bf16.mxu0 0
    %2404 = vmatpush1.bf16.msra.mxu0 %v2271
    %2405 = vmatprep.subr.bf16.mxu0 0
    %2406 = vmatpush1.bf16.msra.mxu0 %v2272
    %2407 = vmatprep.subr.bf16.mxu0 0
    %2408 = vmatpush1.bf16.msra.mxu0 %v2273
    %2409 = vmatprep.subr.bf16.mxu0 0
    %2410 = vmatpush1.bf16.msra.mxu0 %v2274
    %2411 = vmatprep.subr.bf16.mxu0 0
    %2412 = vmatpush1.bf16.msra.mxu0 %v2275
    %2413 = vmatprep.subr.bf16.mxu0 0
    %2414 = vmatpush1.bf16.msra.mxu0 0
    %2415 = vmatprep.subr.bf16.mxu0 0
    %2416 = vmatpush1.bf16.msra.mxu0 0
    %2417 = vmatprep.subr.bf16.mxu0 0
    %2418 = vmatpush1.bf16.msra.mxu0 0
    %2419 = vmatprep.subr.bf16.mxu0 0
    %2420 = vmatpush1.bf16.msra.mxu0 0
    %2421 = vmatprep.subr.bf16.mxu0 0
    %2422 = vmatpush1.bf16.msra.mxu0 0
    %2423 = vmatprep.subr.bf16.mxu0 0
    %2424 = vmatpush1.bf16.msra.mxu0 0
    %2425 = vmatprep.subr.bf16.mxu0 0
    %2426 = vmatpush1.bf16.msra.mxu0 0
    %2427 = vmatprep.subr.bf16.mxu0 0
    %2428 = vmatpush1.bf16.msra.mxu0 0
    %2429 = vmatprep.mubr.bf16.mxu0 0
    %2430 = vmatmul.mubr.bf16.gmra.mrb[0].mxu0 %v1967
    %v2431 = vpop.f32.mrb[0].mxu0
    %v2432 = vadd.f32 %v2335, %v2431
    %v2433 = vpop.f32.mrb[0].mxu0
    %v2434 = vpop.f32.mrb[0].mxu0
    %v2435 = vadd.f32 %v2338, %v2434
    %v2436 = vpop.f32.mrb[0].mxu0
    %2437 = vmatprep.mubr.bf16.mxu0 0
    %2438 = vmatmul.mubr.bf16.gmra.mrb[0].mxu0 %v1969
    %v2439 = vpop.f32.mrb[0].mxu0
    %v2440 = vadd.f32 %v2343, %v2439
    %v2441 = vpop.f32.mrb[0].mxu0
    %v2442 = vpop.f32.mrb[0].mxu0
    %v2443 = vadd.f32 %v2346, %v2442
    %v2444 = vpop.f32.mrb[0].mxu0
    %2445 = vmatprep.mubr.bf16.mxu0 0
    %2446 = vmatmul.mubr.bf16.gmra.mrb[0].mxu0 %v1971
    %v2447 = vpop.f32.mrb[0].mxu0
    %v2448 = vadd.f32 %v2351, %v2447
    %v2449 = vpop.f32.mrb[0].mxu0
    %v2450 = vpop.f32.mrb[0].mxu0
    %v2451 = vadd.f32 %v2354, %v2450
    %v2452 = vpop.f32.mrb[0].mxu0
    %2453 = vmatprep.mubr.bf16.mxu0 0
    %2454 = vmatmul.mubr.bf16.gmra.mrb[0].mxu0 %v2100
    %v2455 = vpop.f32.mrb[0].mxu0
    %v2456 = vadd.f32 %v2359, %v2455
    %v2457 = vpop.f32.mrb[0].mxu0
    %v2458 = vpop.f32.mrb[0].mxu0
    %v2459 = vadd.f32 %v2362, %v2458
    %v2460 = vpop.f32.mrb[0].mxu0
    %2461 = vmatprep.mubr.bf16.mxu0 0
    %2462 = vmatmul.mubr.bf16.gmra.mrb[0].mxu0 %v2042
    %v2463 = vpop.f32.mrb[0].mxu0
    %v2464 = vadd.f32 %v2367, %v2463
    %v2465 = vpop.f32.mrb[0].mxu0
    %v2466 = vpop.f32.mrb[0].mxu0
    %v2467 = vadd.f32 %v2370, %v2466
    %v2468 = vpop.f32.mrb[0].mxu0
    %2469 = vmatprep.mubr.bf16.mxu0 0
    %2470 = vmatmul.mubr.bf16.gmra.mrb[0].mxu0 %v2058
    %v2471 = vpop.f32.mrb[0].mxu0
    %v2472 = vadd.f32 %v2375, %v2471
    %v2473 = vpop.f32.mrb[0].mxu0
    %v2474 = vpop.f32.mrb[0].mxu0
    %v2475 = vadd.f32 %v2378, %v2474
    %v2476 = vpop.f32.mrb[0].mxu0
    %2477 = vmatprep.mubr.bf16.mxu0 0
    %2478 = vmatmul.mubr.bf16.gmra.mrb[0].mxu0 %v2074
    %v2479 = vpop.f32.mrb[0].mxu0
    %v2480 = vadd.f32 %v2383, %v2479
    %v2481 = vpop.f32.mrb[0].mxu0
    %v2482 = vpop.f32.mrb[0].mxu0
    %v2483 = vadd.f32 %v2386, %v2482
    %v2484 = vpop.f32.mrb[0].mxu0
    %2485 = vmatprep.mubr.bf16.mxu0 0
    %2486 = vmatmul.mubr.bf16.gmra.mrb[0].mxu0 %v2080
    %v2487 = vpop.f32.mrb[0].mxu0
    %v2488 = vadd.f32 %v2391, %v2487
    %v2489 = vpop.f32.mrb[0].mxu0
    %v2490 = vpop.f32.mrb[0].mxu0
    %v2491 = vadd.f32 %v2394, %v2490
    %v2492 = vpop.f32.mrb[0].mxu0
    %2493 = vdwg.mxu0
    %v2494 = vmax.f32 %v2432, 0.0
    %v2495 = vmax.f32 %v2435, 0.0
    %v2496 = vmax.f32 %v2440, 0.0
    %v2497 = vmax.f32 %v2443, 0.0
    %v2498 = vmax.f32 %v2448, 0.0
    %v2499 = vmax.f32 %v2451, 0.0
    %v2500 = vmax.f32 %v2456, 0.0
    %v2501 = vmax.f32 %v2459, 0.0
    %v2502 = vmax.f32 %v2464, 0.0
    %v2503 = vmax.f32 %v2467, 0.0
    %v2504 = vmax.f32 %v2472, 0.0
    %v2505 = vmax.f32 %v2475, 0.0
    %v2506 = vmax.f32 %v2480, 0.0
    %v2507 = vmax.f32 %v2483, 0.0
    %v2508 = vmax.f32 %v2488, 0.0
    %v2509 = vmax.f32 %v2491, 0.0
    %v2510 = vpack.c.bf16 %v2495, %v2494
    %v2511 = vpack.c.bf16 %v2497, %v2496
    %v2512 = vpack.c.bf16 %v2499, %v2498
    %v2513 = vpack.c.bf16 %v2501, %v2500
    %v2514 = vpack.c.bf16 %v2502, %v2501
    %v2515 = vpack.c.bf16 %v2504, %v2503
    %v2516 = vpack.c.bf16 %v2506, %v2505
    %v2517 = vpack.c.bf16 %v2508, %v2507
    %v2518 = vpack.c.bf16 %v2509, %v2509
    %v2520 = vshrl.u32 %v2510, 16
    %v2522 = vshll.u32 %v2510, 16
    %v2524 = vrot.slane %v2522, 1
    %v2525 = vor.u32 %v2520, %v2524
    %v2527 = vshll.u32 %v2511, 16
    %v2529 = vrot.slane %v2527, 1
    %v2530 = vsel %vm98, %v2525, %v2529
    %v2531 = vshrl.u32 %v2511, 16
    %v2533 = vor.u32 %v2531, %v2529
    %v2535 = vshll.u32 %v2512, 16
    %v2537 = vrot.slane %v2535, 1
    %v2538 = vsel %vm98, %v2533, %v2537
    %v2539 = vshrl.u32 %v2512, 16
    %v2541 = vor.u32 %v2539, %v2537
    %v2543 = vshll.u32 %v2513, 16
    %v2545 = vrot.slane %v2543, 1
    %v2546 = vsel %vm98, %v2541, %v2545
    %v2547 = vshrl.u32 %v2513, 16
    %v2549 = vor.u32 %v2547, %v2545
    %v2558 = vrot.slane %v2510, 1
    %v2559 = vrot.slane %v2511, 1
    %v2560 = vsel %vm133, %v2558, %v2559
    %v2561 = vrot.slane %v2512, 1
    %v2562 = vsel %vm133, %v2559, %v2561
    %v2563 = vrot.slane %v2513, 1
    %v2564 = vsel %vm133, %v2561, %v2563
    %v2570 = vshrl.u32 %v2514, 16
    %v2572 = vshll.u32 %v2514, 16
    %v2574 = vrot.slane %v2572, 1
    %v2575 = vor.u32 %v2570, %v2574
    %v2577 = vshll.u32 %v2515, 16
    %v2579 = vrot.slane %v2577, 1
    %v2580 = vsel %vm98, %v2575, %v2579
    %v2581 = vshrl.u32 %v2515, 16
    %v2583 = vor.u32 %v2581, %v2579
    %v2585 = vshll.u32 %v2516, 16
    %v2587 = vrot.slane %v2585, 1
    %v2588 = vsel %vm98, %v2583, %v2587
    %v2589 = vshrl.u32 %v2516, 16
    %v2591 = vor.u32 %v2589, %v2587
    %v2593 = vshll.u32 %v2517, 16
    %v2595 = vrot.slane %v2593, 1
    %v2596 = vsel %vm98, %v2591, %v2595
    %v2597 = vshrl.u32 %v2517, 16
    %v2599 = vor.u32 %v2597, %v2595
    %v2601 = vshll.u32 %v2518, 16
    %v2603 = vrot.slane %v2601, 1
    %v2604 = vsel %vm98, %v2599, %v2603
    %v2605 = vshrl.u32 %v2518, 16
    %v2607 = vor.u32 %v2605, %v2603
    %v2613 = vrot.slane %v2514, 1
    %v2614 = vrot.slane %v2515, 1
    %v2615 = vsel %vm133, %v2613, %v2614
    %v2616 = vrot.slane %v2516, 1
    %v2617 = vsel %vm133, %v2614, %v2616
    %v2618 = vrot.slane %v2517, 1
    %v2619 = vsel %vm133, %v2616, %v2618
    %v2620 = vrot.slane %v2518, 1
    %v2621 = vsel %vm133, %v2618, %v2620
    %v2622 = vrot.slane %v2514, 5
    %v2623 = vrot.slane %v2580, 5
    %v2624 = vrot.slane %v2615, 5
    %v2625 = vrot.slane %v2515, 5
    %v2626 = vsel %vm739, %v2622, %v2625
    %v2627 = vrot.slane %v2588, 5
    %v2628 = vsel %vm739, %v2623, %v2627
    %v2629 = vrot.slane %v2617, 5
    %v2630 = vsel %vm739, %v2624, %v2629
    %v2631 = vrot.slane %v2516, 5
    %v2632 = vsel %vm739, %v2625, %v2631
    %v2633 = vrot.slane %v2596, 5
    %v2634 = vsel %vm739, %v2627, %v2633
    %v2635 = vrot.slane %v2619, 5
    %v2636 = vsel %vm739, %v2629, %v2635
    %v2637 = vrot.slane %v2517, 5
    %v2638 = vsel %vm739, %v2631, %v2637
    %v2639 = vrot.slane %v2604, 5
    %v2640 = vsel %vm739, %v2633, %v2639
    %v2641 = vrot.slane %v2621, 5
    %v2642 = vsel %vm739, %v2635, %v2641
    %v2643 = vrot.slane %v2518, 5
    %v2644 = vsel %vm739, %v2637, %v2643
    %v2645 = vrot.slane %v2607, 5
    %v2646 = vsel %vm739, %v2639, %v2645
    %v2647 = vrot.slane %v2620, 5
    %v2648 = vsel %vm739, %v2641, %v2647
    %vm2664 = vsmask.f32 6400
    %vm2665 = vmand %vm133, %vm2664
    %v2666 = vsel %vm2665, %v2513, %v2622
    %v2667 = vsel %vm2665, %v2549, %v2623
    %v2668 = vsel %vm2665, %v2563, %v2624
    %s2669 = scalar_lea.vmem [#allocation5], 192
    %v2670 = vld [vmem:[%s2669] sm:$0xf]
    %v2671 = vld [vmem:[%s2669 + $0x4] sm:$0xf]
    %v2672 = vld [vmem:[%s2669 + $0x8] sm:$0xf]
    %v2673 = vld [vmem:[%s2669 + $0xc] sm:$0xf]
    %v2674 = vld [vmem:[%s2669 + $0x10] sm:$0xf]
    %v2675 = vld [vmem:[%s2669 + $0x14] sm:$0xf]
    %v2676 = vld [vmem:[%s2669 + $0x18] sm:$0xf]
    %v2677 = vld [vmem:[%s2669 + $0x1c] sm:$0xf]
    %v2678 = vld [vmem:[%s2669 + $0x20] sm:$0xf]
    %v2679 = vld [vmem:[%s2669 + $0x24] sm:$0xf]
    %v2680 = vld [vmem:[%s2669 + $0x28] sm:$0xf]
    %v2681 = vld [vmem:[%s2669 + $0x2c] sm:$0xf]
    %v2682 = vld [vmem:[%s2669 + $0x30] sm:$0xf]
    %v2683 = vld [vmem:[%s2669 + $0x34] sm:$0xf]
    %v2684 = vld [vmem:[%s2669 + $0x38] sm:$0xf]
    %v2685 = vld [vmem:[%s2669 + $0x3c] sm:$0xf]
    %v2686 = vld [vmem:[%s2669 + $0x40] sm:$0xf]
    %v2687 = vld [vmem:[%s2669 + $0x44] sm:$0xf]
    %v2688 = vld [vmem:[%s2669 + $0x48] sm:$0xf]
    %v2689 = vld [vmem:[%s2669 + $0x4c] sm:$0xf]
    %v2690 = vld [vmem:[%s2669 + $0x50] sm:$0xf]
    %v2691 = vld [vmem:[%s2669 + $0x54] sm:$0xf]
    %v2692 = vld [vmem:[%s2669 + $0x58] sm:$0xf]
    %v2693 = vld [vmem:[%s2669 + $0x5c] sm:$0xf]
    %v2694 = vld [vmem:[%s2669 + $0x60] sm:$0xf]
    %v2695 = vld [vmem:[%s2669 + $0x64] sm:$0xf]
    %v2696 = vld [vmem:[%s2669 + $0x68] sm:$0xf]
    %v2697 = vld [vmem:[%s2669 + $0x6c] sm:$0xf]
    %v2698 = vld [vmem:[%s2669 + $0x70] sm:$0xf]
    %v2699 = vld [vmem:[%s2669 + $0x74] sm:$0xf]
    %v2700 = vld [vmem:[%s2669 + $0x78] sm:$0xf]
    %v2701 = vld [vmem:[%s2669 + $0x7c] sm:$0xf]
    %v2702 = vld [vmem:[%s2669 + $0x80] sm:$0xf]
    %v2703 = vld [vmem:[%s2669 + $0x84] sm:$0xf]
    %v2704 = vld [vmem:[%s2669 + $0x88] sm:$0xf]
    %v2705 = vld [vmem:[%s2669 + $0x8c] sm:$0xf]
    %v2706 = vld [vmem:[%s2669 + $0x90] sm:$0xf]
    %v2707 = vld [vmem:[%s2669 + $0x94] sm:$0xf]
    %v2708 = vld [vmem:[%s2669 + $0x98] sm:$0xf]
    %v2709 = vld [vmem:[%s2669 + $0x9c] sm:$0xf]
    %v2710 = vld [vmem:[%s2669 + $0xa0] sm:$0xf]
    %v2711 = vld [vmem:[%s2669 + $0xa4] sm:$0xf]
    %v2712 = vld [vmem:[%s2669 + $0xa8] sm:$0xf]
    %v2713 = vld [vmem:[%s2669 + $0xac] sm:$0xf]
    %v2714 = vld [vmem:[%s2669 + $0xb0] sm:$0xf]
    %v2715 = vld [vmem:[%s2669 + $0xb4] sm:$0xf]
    %v2716 = vld [vmem:[%s2669 + $0xb8] sm:$0xf]
    %v2717 = vld [vmem:[%s2669 + $0xbc] sm:$0xf]
    %s2718 = scalar_lea.vmem %s4, 1
    %v2719 = vld [vmem:[%s2718] sm:$0x1]
    %v2721 = vlaneseq
    %v2722 = vshrl.u32 %v2721, 7
    %v2723 = vsub.s32 0, %v2722
    %v2724 = vrot.slane %v2719, %v2723
    %v2774 = vunpack.c.l.b16 %v2670
    %v2775 = vunpack.c.l.b16 %v2671
    %v2776 = vunpack.c.l.b16 %v2672
    %v2777 = vunpack.c.l.b16 %v2673
    %v2778 = vunpack.c.l.b16 %v2674
    %v2779 = vunpack.c.l.b16 %v2675
    %v2780 = vunpack.c.l.b16 %v2676
    %v2781 = vunpack.c.l.b16 %v2677
    %v2782 = vunpack.c.l.b16 %v2678
    %v2783 = vunpack.c.l.b16 %v2679
    %v2784 = vunpack.c.l.b16 %v2680
    %v2785 = vunpack.c.l.b16 %v2681
    %v2786 = vunpack.c.l.b16 %v2682
    %v2787 = vunpack.c.l.b16 %v2683
    %v2788 = vunpack.c.l.b16 %v2684
    %v2789 = vunpack.c.l.b16 %v2685
    %v2790 = vunpack.c.l.b16 %v2686
    %v2791 = vunpack.c.l.b16 %v2687
    %v2792 = vunpack.c.l.b16 %v2688
    %v2793 = vunpack.c.l.b16 %v2689
    %v2794 = vunpack.c.l.b16 %v2690
    %v2795 = vunpack.c.l.b16 %v2691
    %v2796 = vunpack.c.l.b16 %v2692
    %v2797 = vunpack.c.l.b16 %v2693
    %v2798 = vunpack.c.l.b16 %v2694
    %v2799 = vunpack.c.l.b16 %v2695
    %v2800 = vunpack.c.l.b16 %v2696
    %v2801 = vunpack.c.l.b16 %v2697
    %v2802 = vunpack.c.l.b16 %v2698
    %v2803 = vunpack.c.l.b16 %v2699
    %v2804 = vunpack.c.l.b16 %v2700
    %v2805 = vunpack.c.l.b16 %v2701
    %v2806 = vunpack.c.l.b16 %v2702
    %v2807 = vunpack.c.l.b16 %v2703
    %v2808 = vunpack.c.l.b16 %v2704
    %v2809 = vunpack.c.l.b16 %v2705
    %v2810 = vunpack.c.l.b16 %v2706
    %v2811 = vunpack.c.l.b16 %v2707
    %v2812 = vunpack.c.l.b16 %v2708
    %v2813 = vunpack.c.l.b16 %v2709
    %v2814 = vunpack.c.l.b16 %v2710
    %v2815 = vunpack.c.l.b16 %v2711
    %v2816 = vunpack.c.l.b16 %v2712
    %v2817 = vunpack.c.l.b16 %v2713
    %v2818 = vunpack.c.l.b16 %v2714
    %v2819 = vunpack.c.l.b16 %v2715
    %v2820 = vunpack.c.l.b16 %v2716
    %v2821 = vunpack.c.l.b16 %v2717
    %v2822 = vpack.c.b16 %v2775, %v2774
    %v2823 = vpack.c.b16 %v2777, %v2776
    %v2824 = vpack.c.b16 %v2779, %v2778
    %v2825 = vpack.c.b16 %v2781, %v2780
    %v2826 = vpack.c.b16 %v2783, %v2782
    %v2827 = vpack.c.b16 %v2785, %v2784
    %v2828 = vpack.c.b16 %v2787, %v2786
    %v2829 = vpack.c.b16 %v2789, %v2788
    %v2830 = vpack.c.b16 %v2791, %v2790
    %v2831 = vpack.c.b16 %v2793, %v2792
    %v2832 = vpack.c.b16 %v2795, %v2794
    %v2833 = vpack.c.b16 %v2797, %v2796
    %v2834 = vpack.c.b16 %v2799, %v2798
    %v2835 = vpack.c.b16 %v2801, %v2800
    %v2836 = vpack.c.b16 %v2803, %v2802
    %v2837 = vpack.c.b16 %v2805, %v2804
    %v2838 = vpack.c.b16 %v2807, %v2806
    %v2839 = vpack.c.b16 %v2809, %v2808
    %v2840 = vpack.c.b16 %v2811, %v2810
    %v2841 = vpack.c.b16 %v2813, %v2812
    %v2842 = vpack.c.b16 %v2815, %v2814
    %v2843 = vpack.c.b16 %v2817, %v2816
    %v2844 = vpack.c.b16 %v2819, %v2818
    %v2845 = vpack.c.b16 %v2821, %v2820
    %2870 = vmatprep.subr.bf16.mxu0 0
    %2871 = vmatpush1.bf16.msra.mxu0 %v2822
    %2872 = vmatprep.subr.bf16.mxu0 0
    %2873 = vmatpush1.bf16.msra.mxu0 %v2823
    %2874 = vmatprep.subr.bf16.mxu0 0
    %2875 = vmatpush1.bf16.msra.mxu0 %v2824
    %2876 = vmatprep.subr.bf16.mxu0 0
    %2877 = vmatpush1.bf16.msra.mxu0 %v2825
    %2878 = vmatprep.subr.bf16.mxu0 0
    %2879 = vmatpush1.bf16.msra.mxu0 %v2826
    %2880 = vmatprep.subr.bf16.mxu0 0
    %2881 = vmatpush1.bf16.msra.mxu0 %v2827
    %2882 = vmatprep.subr.bf16.mxu0 0
    %2883 = vmatpush1.bf16.msra.mxu0 %v2828
    %2884 = vmatprep.subr.bf16.mxu0 0
    %2885 = vmatpush1.bf16.msra.mxu0 %v2829
    %2886 = vmatprep.subr.bf16.mxu0 0
    %2887 = vmatpush1.bf16.msra.mxu0 %v2830
    %2888 = vmatprep.subr.bf16.mxu0 0
    %2889 = vmatpush1.bf16.msra.mxu0 %v2831
    %2890 = vmatprep.subr.bf16.mxu0 0
    %2891 = vmatpush1.bf16.msra.mxu0 %v2832
    %2892 = vmatprep.subr.bf16.mxu0 0
    %2893 = vmatpush1.bf16.msra.mxu0 %v2833
    %2894 = vmatprep.subr.bf16.mxu0 0
    %2895 = vmatpush1.bf16.msra.mxu0 %v2834
    %2896 = vmatprep.subr.bf16.mxu0 0
    %2897 = vmatpush1.bf16.msra.mxu0 %v2835
    %2898 = vmatprep.subr.bf16.mxu0 0
    %2899 = vmatpush1.bf16.msra.mxu0 %v2836
    %2900 = vmatprep.subr.bf16.mxu0 0
    %2901 = vmatpush1.bf16.msra.mxu0 %v2837
    %2902 = vmatprep.mubr.bf16.mxu0 %v2530
    %2903 = vmatmul.mubr.bf16.gmra.mrb[0].mxu0 %v2510
    %v2904 = vpop.f32.mrb[0].mxu0
    %v2905 = vadd.f32 %v2724, %v2904
    %v2906 = vpop.f32.mrb[0].mxu0
    %v2907 = vpop.f32.mrb[0].mxu0
    %v2908 = vadd.f32 %v2724, %v2907
    %v2909 = vpop.f32.mrb[0].mxu0
    %2910 = vmatprep.mubr.bf16.mxu0 %v2538
    %2911 = vmatmul.mubr.bf16.gmra.mrb[0].mxu0 %v2511
    %v2912 = vpop.f32.mrb[0].mxu0
    %v2913 = vadd.f32 %v2724, %v2912
    %v2914 = vpop.f32.mrb[0].mxu0
    %v2915 = vpop.f32.mrb[0].mxu0
    %v2916 = vadd.f32 %v2724, %v2915
    %v2917 = vpop.f32.mrb[0].mxu0
    %2918 = vmatprep.mubr.bf16.mxu0 %v2546
    %2919 = vmatmul.mubr.bf16.gmra.mrb[0].mxu0 %v2512
    %v2920 = vpop.f32.mrb[0].mxu0
    %v2921 = vadd.f32 %v2724, %v2920
    %v2922 = vpop.f32.mrb[0].mxu0
    %v2923 = vpop.f32.mrb[0].mxu0
    %v2924 = vadd.f32 %v2724, %v2923
    %v2925 = vpop.f32.mrb[0].mxu0
    %2926 = vmatprep.mubr.bf16.mxu0 %v2667
    %2927 = vmatmul.mubr.bf16.gmra.mrb[0].mxu0 %v2666
    %v2928 = vpop.f32.mrb[0].mxu0
    %v2929 = vadd.f32 %v2724, %v2928
    %v2930 = vpop.f32.mrb[0].mxu0
    %v2931 = vpop.f32.mrb[0].mxu0
    %v2932 = vadd.f32 %v2724, %v2931
    %v2933 = vpop.f32.mrb[0].mxu0
    %2934 = vmatprep.mubr.bf16.mxu0 %v2628
    %2935 = vmatmul.mubr.bf16.gmra.mrb[0].mxu0 %v2626
    %v2936 = vpop.f32.mrb[0].mxu0
    %v2937 = vadd.f32 %v2724, %v2936
    %v2938 = vpop.f32.mrb[0].mxu0
    %v2939 = vpop.f32.mrb[0].mxu0
    %v2940 = vadd.f32 %v2724, %v2939
    %v2941 = vpop.f32.mrb[0].mxu0
    %2942 = vmatprep.mubr.bf16.mxu0 %v2634
    %2943 = vmatmul.mubr.bf16.gmra.mrb[0].mxu0 %v2632
    %v2944 = vpop.f32.mrb[0].mxu0
    %v2945 = vadd.f32 %v2724, %v2944
    %v2946 = vpop.f32.mrb[0].mxu0
    %v2947 = vpop.f32.mrb[0].mxu0
    %v2948 = vadd.f32 %v2724, %v2947
    %v2949 = vpop.f32.mrb[0].mxu0
    %2950 = vmatprep.mubr.bf16.mxu0 %v2640
    %2951 = vmatmul.mubr.bf16.gmra.mrb[0].mxu0 %v2638
    %v2952 = vpop.f32.mrb[0].mxu0
    %v2953 = vadd.f32 %v2724, %v2952
    %v2954 = vpop.f32.mrb[0].mxu0
    %v2955 = vpop.f32.mrb[0].mxu0
    %v2956 = vadd.f32 %v2724, %v2955
    %v2957 = vpop.f32.mrb[0].mxu0
    %2958 = vmatprep.mubr.bf16.mxu0 %v2646
    %2959 = vmatmul.mubr.bf16.gmra.mrb[0].mxu0 %v2644
    %v2960 = vpop.f32.mrb[0].mxu0
    %v2961 = vadd.f32 %v2724, %v2960
    %v2962 = vpop.f32.mrb[0].mxu0
    %v2963 = vpop.f32.mrb[0].mxu0
    %v2964 = vadd.f32 %v2724, %v2963
    %v2965 = vpop.f32.mrb[0].mxu0
    %2966 = vdwg.mxu0
    %2967 = vmatprep.subr.bf16.mxu0 0
    %2968 = vmatpush1.bf16.msra.mxu0 %v2838
    %2969 = vmatprep.subr.bf16.mxu0 0
    %2970 = vmatpush1.bf16.msra.mxu0 %v2839
    %2971 = vmatprep.subr.bf16.mxu0 0
    %2972 = vmatpush1.bf16.msra.mxu0 %v2840
    %2973 = vmatprep.subr.bf16.mxu0 0
    %2974 = vmatpush1.bf16.msra.mxu0 %v2841
    %2975 = vmatprep.subr.bf16.mxu0 0
    %2976 = vmatpush1.bf16.msra.mxu0 %v2842
    %2977 = vmatprep.subr.bf16.mxu0 0
    %2978 = vmatpush1.bf16.msra.mxu0 %v2843
    %2979 = vmatprep.subr.bf16.mxu0 0
    %2980 = vmatpush1.bf16.msra.mxu0 %v2844
    %2981 = vmatprep.subr.bf16.mxu0 0
    %2982 = vmatpush1.bf16.msra.mxu0 %v2845
    %2983 = vmatprep.subr.bf16.mxu0 0
    %2984 = vmatpush1.bf16.msra.mxu0 0
    %2985 = vmatprep.subr.bf16.mxu0 0
    %2986 = vmatpush1.bf16.msra.mxu0 0
    %2987 = vmatprep.subr.bf16.mxu0 0
    %2988 = vmatpush1.bf16.msra.mxu0 0
    %2989 = vmatprep.subr.bf16.mxu0 0
    %2990 = vmatpush1.bf16.msra.mxu0 0
    %2991 = vmatprep.subr.bf16.mxu0 0
    %2992 = vmatpush1.bf16.msra.mxu0 0
    %2993 = vmatprep.subr.bf16.mxu0 0
    %2994 = vmatpush1.bf16.msra.mxu0 0
    %2995 = vmatprep.subr.bf16.mxu0 0
    %2996 = vmatpush1.bf16.msra.mxu0 0
    %2997 = vmatprep.subr.bf16.mxu0 0
    %2998 = vmatpush1.bf16.msra.mxu0 0
    %2999 = vmatprep.mubr.bf16.mxu0 0
    %3000 = vmatmul.mubr.bf16.gmra.mrb[0].mxu0 %v2560
    %v3001 = vpop.f32.mrb[0].mxu0
    %v3002 = vadd.f32 %v2905, %v3001
    %v3003 = vpop.f32.mrb[0].mxu0
    %v3004 = vpop.f32.mrb[0].mxu0
    %v3005 = vadd.f32 %v2908, %v3004
    %v3006 = vpop.f32.mrb[0].mxu0
    %3007 = vmatprep.mubr.bf16.mxu0 0
    %3008 = vmatmul.mubr.bf16.gmra.mrb[0].mxu0 %v2562
    %v3009 = vpop.f32.mrb[0].mxu0
    %v3010 = vadd.f32 %v2913, %v3009
    %v3011 = vpop.f32.mrb[0].mxu0
    %v3012 = vpop.f32.mrb[0].mxu0
    %v3013 = vadd.f32 %v2916, %v3012
    %v3014 = vpop.f32.mrb[0].mxu0
    %3015 = vmatprep.mubr.bf16.mxu0 0
    %3016 = vmatmul.mubr.bf16.gmra.mrb[0].mxu0 %v2564
    %v3017 = vpop.f32.mrb[0].mxu0
    %v3018 = vadd.f32 %v2921, %v3017
    %v3019 = vpop.f32.mrb[0].mxu0
    %v3020 = vpop.f32.mrb[0].mxu0
    %v3021 = vadd.f32 %v2924, %v3020
    %v3022 = vpop.f32.mrb[0].mxu0
    %3023 = vmatprep.mubr.bf16.mxu0 0
    %3024 = vmatmul.mubr.bf16.gmra.mrb[0].mxu0 %v2668
    %v3025 = vpop.f32.mrb[0].mxu0
    %v3026 = vadd.f32 %v2929, %v3025
    %v3027 = vpop.f32.mrb[0].mxu0
    %v3028 = vpop.f32.mrb[0].mxu0
    %v3029 = vadd.f32 %v2932, %v3028
    %v3030 = vpop.f32.mrb[0].mxu0
    %3031 = vmatprep.mubr.bf16.mxu0 0
    %3032 = vmatmul.mubr.bf16.gmra.mrb[0].mxu0 %v2630
    %v3033 = vpop.f32.mrb[0].mxu0
    %v3034 = vadd.f32 %v2937, %v3033
    %v3035 = vpop.f32.mrb[0].mxu0
    %v3036 = vpop.f32.mrb[0].mxu0
    %v3037 = vadd.f32 %v2940, %v3036
    %v3038 = vpop.f32.mrb[0].mxu0
    %3039 = vmatprep.mubr.bf16.mxu0 0
    %3040 = vmatmul.mubr.bf16.gmra.mrb[0].mxu0 %v2636
    %v3041 = vpop.f32.mrb[0].mxu0
    %v3042 = vadd.f32 %v2945, %v3041
    %v3043 = vpop.f32.mrb[0].mxu0
    %v3044 = vpop.f32.mrb[0].mxu0
    %v3045 = vadd.f32 %v2948, %v3044
    %v3046 = vpop.f32.mrb[0].mxu0
    %3047 = vmatprep.mubr.bf16.mxu0 0
    %3048 = vmatmul.mubr.bf16.gmra.mrb[0].mxu0 %v2642
    %v3049 = vpop.f32.mrb[0].mxu0
    %v3050 = vadd.f32 %v2953, %v3049
    %v3051 = vpop.f32.mrb[0].mxu0
    %v3052 = vpop.f32.mrb[0].mxu0
    %v3053 = vadd.f32 %v2956, %v3052
    %v3054 = vpop.f32.mrb[0].mxu0
    %3055 = vmatprep.mubr.bf16.mxu0 0
    %3056 = vmatmul.mubr.bf16.gmra.mrb[0].mxu0 %v2648
    %v3057 = vpop.f32.mrb[0].mxu0
    %v3058 = vadd.f32 %v2961, %v3057
    %v3059 = vpop.f32.mrb[0].mxu0
    %v3060 = vpop.f32.mrb[0].mxu0
    %v3061 = vadd.f32 %v2964, %v3060
    %v3062 = vpop.f32.mrb[0].mxu0
    %3063 = vdwg.mxu0
    %3064 = vxpose.xlu0.b32.start [1/16] %v3002, 128
    %3065 = vxpose.xlu0.b32.cont [2/16] %v3005, 128
    %3066 = vxpose.xlu0.b32.cont [3/16] %v3010, 128
    %3067 = vxpose.xlu0.b32.cont [4/16] %v3013, 128
    %3068 = vxpose.xlu0.b32.cont [5/16] %v3018, 128
    %3069 = vxpose.xlu0.b32.cont [6/16] %v3021, 128
    %3070 = vxpose.xlu0.b32.cont [7/16] %v3026, 128
    %3071 = vxpose.xlu0.b32.cont [8/16] %v3029, 128
    %3072 = vxpose.xlu0.b32.cont [9/16] 0.0, 128
    %3073 = vxpose.xlu0.b32.cont [10/16] 0.0, 128
    %3074 = vxpose.xlu0.b32.cont [11/16] 0.0, 128
    %3075 = vxpose.xlu0.b32.cont [12/16] 0.0, 128
    %3076 = vxpose.xlu0.b32.cont [13/16] 0.0, 128
    %3077 = vxpose.xlu0.b32.cont [14/16] 0.0, 128
    %3078 = vxpose.xlu0.b32.cont [15/16] 0.0, 128
    %3079 = vxpose.xlu0.b32.end [16/16] 0.0, 128
    %v3080 = vpop.trf.xlu0
    %v3081 = vpop.trf.xlu0
    %v3082 = vpop.trf.xlu0
    %v3083 = vpop.trf.xlu0
    %v3084 = vpop.trf.xlu0
    %v3085 = vpop.trf.xlu0
    %v3086 = vpop.trf.xlu0
    %v3087 = vpop.trf.xlu0
    %v3088 = vpop.trf.xlu0
    %v3089 = vpop.trf.xlu0
    %v3090 = vpop.trf.xlu0
    %v3091 = vpop.trf.xlu0
    %v3092 = vpop.trf.xlu0
    %v3093 = vpop.trf.xlu0
    %v3094 = vpop.trf.xlu0
    %v3095 = vpop.trf.xlu0
    %vm3096 = vcmask 498688
    %3097 = vst.msk [vmem:[#allocation8] sm:$0xff] %vm3096, %v3080
    %3098 = vst.msk [vmem:[#allocation8 + $0x8] sm:$0xff] %vm3096, %v3081
    %3099 = vst.msk [vmem:[#allocation8 + $0x10] sm:$0xff] %vm3096, %v3082
    %3100 = vst.msk [vmem:[#allocation8 + $0x18] sm:$0xff] %vm3096, %v3083
    %vm3110 = vcmask 1042432
    %v3111 = vrot.slane %v3029, 5
    %v3112 = vrot.slane %v3034, 5
    %v3113 = vsel %vm3110, %v3111, %v3112
    %v3114 = vrot.slane %v3037, 5
    %v3115 = vsel %vm3110, %v3112, %v3114
    %v3116 = vrot.slane %v3042, 5
    %v3117 = vsel %vm3110, %v3114, %v3116
    %v3118 = vrot.slane %v3045, 5
    %v3119 = vsel %vm3110, %v3116, %v3118
    %v3120 = vrot.slane %v3050, 5
    %v3121 = vsel %vm3110, %v3118, %v3120
    %v3122 = vrot.slane %v3053, 5
    %v3123 = vsel %vm3110, %v3120, %v3122
    %v3124 = vrot.slane %v3058, 5
    %v3125 = vsel %vm3110, %v3122, %v3124
    %v3126 = vrot.slane %v3061, 5
    %v3127 = vsel %vm3110, %v3124, %v3126
    %3136 = vxpose.xlu0.b32.start [1/16] %v3113, 128
    %3137 = vxpose.xlu0.b32.cont [2/16] %v3115, 128
    %3138 = vxpose.xlu0.b32.cont [3/16] %v3117, 128
    %3139 = vxpose.xlu0.b32.cont [4/16] %v3119, 128
    %3140 = vxpose.xlu0.b32.cont [5/16] %v3121, 128
    %3141 = vxpose.xlu0.b32.cont [6/16] %v3123, 128
    %3142 = vxpose.xlu0.b32.cont [7/16] %v3125, 128
    %3143 = vxpose.xlu0.b32.cont [8/16] %v3127, 128
    %3144 = vxpose.xlu0.b32.cont [9/16] 0.0, 128
    %3145 = vxpose.xlu0.b32.cont [10/16] 0.0, 128
    %3146 = vxpose.xlu0.b32.cont [11/16] 0.0, 128
    %3147 = vxpose.xlu0.b32.cont [12/16] 0.0, 128
    %3148 = vxpose.xlu0.b32.cont [13/16] 0.0, 128
    %3149 = vxpose.xlu0.b32.cont [14/16] 0.0, 128
    %3150 = vxpose.xlu0.b32.cont [15/16] 0.0, 128
    %3151 = vxpose.xlu0.b32.end [16/16] 0.0, 128
    %v3152 = vpop.trf.xlu0
    %v3153 = vpop.trf.xlu0
    %v3154 = vpop.trf.xlu0
    %v3155 = vpop.trf.xlu0
    %v3156 = vpop.trf.xlu0
    %v3157 = vpop.trf.xlu0
    %v3158 = vpop.trf.xlu0
    %v3159 = vpop.trf.xlu0
    %v3160 = vpop.trf.xlu0
    %v3161 = vpop.trf.xlu0
    %v3162 = vpop.trf.xlu0
    %v3163 = vpop.trf.xlu0
    %v3164 = vpop.trf.xlu0
    %v3165 = vpop.trf.xlu0
    %v3166 = vpop.trf.xlu0
    %v3167 = vpop.trf.xlu0
    %s3168 = scalar_lea.vmem [#allocation8], 32
    %3169 = vst.msk [vmem:[%s3168] sm:$0xff] %vm3096, %v3152
    %3170 = vst.msk [vmem:[%s3168 + $0x8] sm:$0xff] %vm3096, %v3153
    %3171 = vst.msk [vmem:[%s3168 + $0x10] sm:$0xff] %vm3096, %v3154
    %3172 = vst.msk [vmem:[%s3168 + $0x18] sm:$0xff] %vm3096, %v3155
    // Predicated region
    $region30: #{forward.1} parent=1 // pred_check
      _
    $region31: #{forward.1} parent=1 // pred_check_branch
      %3174 = sbr.rel (0) target = $region33
    $region32: #{forward.1} parent=1 // pred_region
      %s3176 = ssub.s32 1024, 1024
      %3177 = vsyncadd [#allocation4], %s3176
      %s3178 = sshll.u32 [#allocation7], 4
      %s3179 = int_to_ptr.vmem [resolvable:$true] %s3178
      %3184 = dma.vmem_to_hbm [thread:$0]  %s3179, 1024, %s5, [#allocation4], 128, 128, 8
    $region33: #{forward.1} parent=1 // pred_fallthru
      _
    // Predicated region
    $region34: #{forward.1} parent=1 // pred_check
      _
    $region35: #{forward.1} parent=1 // pred_check_branch
      %3186 = sbr.rel (0) target = $region37
    $region36: #{forward.1} parent=1 // pred_region
      %s3188 = ssub.s32 1024, 1024
      %3189 = vsyncadd [#allocation9], %s3188
      %s3190 = sshll.u32 [#allocation8], 4
      %s3191 = int_to_ptr.vmem [resolvable:$true] %s3190
      %3196 = dma.vmem_to_hbm [thread:$0]  %s3191, 1024, %s6, [#allocation9], 128, 128, 8
    $region37: #{forward.1} parent=1 // pred_fallthru
      _
    // Predicated region
    $region38: #{forward.1} parent=1 // pred_check
      _
    $region39: #{forward.1} parent=1 // pred_check_branch
      %3198 = sbr.rel (0) target = $region41
    $region40: #{forward.1} parent=1 // pred_region
      %3199 = dma.done [#allocation4], 1024
    $region41: #{forward.1} parent=1 // pred_fallthru
      _
    // Predicated region
    $region42: #{forward.1} parent=1 // pred_check
      _
    $region43: #{forward.1} parent=1 // pred_check_branch
      %3201 = sbr.rel (0) target = $region45
    $region44: #{forward.1} parent=1 // pred_region
      %3202 = dma.done [#allocation9], 1024
    $region45: #{forward.1} parent=1 // pred_fallthru
      _
    %3203 = vsyncpa [#allocation3], 1
    %3204 = vsyncpa [#allocation6], 1
    %3205 = vsyncpa [#allocation4], 1
    %3206 = vsyncpa [#allocation9], 1

</llo_original>
